<compile_context>
chip_gen: v6e
topology: v6e:2x2x1
jax: 0.10.0
libtpu: 0.0.40
codegen_flags: <defaults>
</compile_context>

<pallas_src>
import math

import jax
import jax.numpy as jnp
from jax import lax
from jax.experimental import pallas as pl
from jax.experimental.pallas import tpu as pltpu

# ---------------- hyperparameters (small, synthetic) ----------------
INPUT_DIM = 32
HIDDEN_DIM = 32
NUM_CLASSES = 3
BATCH = 2
SEQ = 8

_SQRT2 = math.sqrt(2.0)

# weight-slab segment offsets (each segment starts on a 128-lane boundary)
_SEG = 128
_OFF_W1 = 0 * _SEG      # fused attention layer-1: [aw1 | ow1]          (D, D)
_OFF_W2 = 1 * _SEG      # block-diag attention layer-2: [aw2 ; ow2]     (D, 2)
_OFF_FWA = 2 * _SEG     # fusion weight, aspect half                    (D, H)
_OFF_FWO = 3 * _SEG     # fusion weight, opinion half                   (D, H)
_OFF_CK1 = 4 * _SEG     # fused classifier/confidence layer-1 [cw1|kw1] (H, H)
_OFF_OUT = 5 * _SEG     # block-diag output head [cw2 ; kw2]            (H, 128)
_W_LANES = 6 * _SEG
_OUT_LANES = 128

# bias rows appended below the D weight rows of the same slab (no separate DMA)
_ROW_B1 = INPUT_DIM + 0     # [ab1 | ob1]                lanes 0:D
_ROW_B2 = INPUT_DIM + 1     # [ab2, ob2]                 lanes 0:2
_ROW_FB = INPUT_DIM + 2     # fusion bias                lanes 0:H
_ROW_BCK = INPUT_DIM + 3    # [cb1 | kb1]                lanes 0:H
_ROW_BOUT = INPUT_DIM + 4   # [cb2(3), kb2(1), 0...]     lanes 0:128
_SLAB_ROWS = INPUT_DIM + 8  # 40 rows (multiple of 8 sublanes)


def _gelu_exact(x):
    # matches torch nn.GELU() (erf-based, not tanh approximation)
    return 0.5 * x * (1.0 + lax.erf(x / _SQRT2))


def _nan_to_num(x):
    # matches torch.nan_to_num defaults: nan->0, +inf->max, -inf->min
    finfo = jnp.finfo(jnp.float32)
    x = jnp.where(jnp.isnan(x), 0.0, x)
    x = jnp.where(x == jnp.inf, finfo.max, x)
    x = jnp.where(x == -jnp.inf, finfo.min, x)
    return x


def classifier_kernel(hs_ref, mask_ref, w_ref, out_ref):
    TB, S, D = hs_ref.shape
    H = HIDDEN_DIM

    hs3 = hs_ref[...]                          # (TB, S, D)
    hs_flat = hs3.reshape(TB * S, D)           # layout no-op (S == sublane tile)
    mask3 = mask_ref[...]                      # (TB, S, 1) float {0,1}

    # ---- fused aspect+opinion attention MLP: 1 tanh matmul + 1 score matmul
    w1 = w_ref[0:D, _OFF_W1:_OFF_W1 + D]       # (D, D)   [aw1 | ow1]
    b1 = w_ref[_ROW_B1:_ROW_B1 + 1, 0:D]       # (1, D)   [ab1 | ob1]
    h1 = jnp.tanh(jnp.dot(hs_flat, w1, preferred_element_type=jnp.float32) + b1)

    w2 = w_ref[0:D, _OFF_W2:_OFF_W2 + 2]       # (D, 2)   block-diag [aw2 ; ow2]
    b2 = w_ref[_ROW_B2:_ROW_B2 + 1, 0:2]       # (1, 2)   [ab2, ob2]
    scores = jnp.dot(h1, w2, preferred_element_type=jnp.float32) + b2   # (TB*S, 2)
    scores = scores.reshape(TB, S, 2)          # col 0 = aspect, col 1 = opinion

    # ---- masked softmax over the sequence axis (both branches at once)
    scores = jnp.where(mask3 == 0.0, -1e10, scores)
    scores = scores - jnp.max(scores, axis=1, keepdims=True)
    e = jnp.exp(scores)
    w = e / jnp.sum(e, axis=1, keepdims=True)                 # (TB, S, 2)

    # torch.where fallback to uniform-over-mask (faithful to reference; the
    # reference also checks the already-normalized sum, so it only fires on NaN)
    w_sum = jnp.sum(w, axis=1, keepdims=True)                 # (TB, 1, 2)
    m_sum = jnp.maximum(jnp.sum(mask3, axis=1, keepdims=True), 1e-6)
    fallback = mask3 / m_sum                                  # (TB, S, 1)
    w = jnp.where(w_sum > 1e-6, w, fallback)

    # ---- weighted pooling: one batched MXU contraction over S (was VPU+XLU)
    reprs = _nan_to_num(
        jnp.einsum('bsk,bsd->bkd', w, hs3,
                   preferred_element_type=jnp.float32))       # (TB, 2, D)
    a_repr = reprs[:, 0, :]                                   # (TB, D)
    o_repr = reprs[:, 1, :]                                   # (TB, D)

    # ---- fusion: [a_repr|o_repr] @ fw + fb, done as two dots (no concat)
    fw_a = w_ref[0:D, _OFF_FWA:_OFF_FWA + H]
    fw_o = w_ref[0:D, _OFF_FWO:_OFF_FWO + H]
    fb = w_ref[_ROW_FB:_ROW_FB + 1, 0:H]
    fused = _gelu_exact(
        jnp.dot(a_repr, fw_a, preferred_element_type=jnp.float32)
        + jnp.dot(o_repr, fw_o, preferred_element_type=jnp.float32) + fb)  # (TB, H)

    # ---- fused classifier / confidence hidden layer: one matmul + one GELU
    w_ck = w_ref[0:H, _OFF_CK1:_OFF_CK1 + H]   # (H, H)  [cw1 | kw1]
    b_ck = w_ref[_ROW_BCK:_ROW_BCK + 1, 0:H]   # (1, H)  [cb1 | kb1]
    h = _gelu_exact(
        jnp.dot(fused, w_ck, preferred_element_type=jnp.float32) + b_ck)   # (TB, H)

    # ---- lane-dense block-diag output head: cols 0..2 = logits, col 3 = conf
    w_out = w_ref[0:H, _OFF_OUT:_OFF_OUT + _OUT_LANES]   # (H, 128)
    b_out = w_ref[_ROW_BOUT:_ROW_BOUT + 1, 0:_OUT_LANES]  # (1, 128)
    out_lin = jnp.dot(h, w_out, preferred_element_type=jnp.float32) + b_out
    lane = lax.broadcasted_iota(jnp.int32, out_lin.shape, 1)
    out_ref[...] = jnp.where(lane == NUM_CLASSES, jax.nn.sigmoid(out_lin), out_lin)


def make_params(key):
    """Deterministic parameter init (torch-style uniform(-1/sqrt(fan_in), +))."""
    def linear(k, fan_in, fan_out, bias_fill=None):
        kw, kb = jax.random.split(k)
        bound = 1.0 / math.sqrt(fan_in)
        w = jax.random.uniform(kw, (fan_in, fan_out), jnp.float32, -bound, bound)
        if bias_fill is None:
            b = jax.random.uniform(kb, (1, fan_out), jnp.float32, -bound, bound)
        else:
            b = jnp.full((1, fan_out), bias_fill, jnp.float32)
        return w, b

    keys = jax.random.split(key, 9)
    aw1, ab1 = linear(keys[0], INPUT_DIM, INPUT_DIM // 2)     # aspect_attention[0]
    aw2, ab2 = linear(keys[1], INPUT_DIM // 2, 1)             # aspect_attention[2]
    ow1, ob1 = linear(keys[2], INPUT_DIM, INPUT_DIM // 2)     # opinion_attention[0]
    ow2, ob2 = linear(keys[3], INPUT_DIM // 2, 1)             # opinion_attention[2]
    fw, fb = linear(keys[4], INPUT_DIM * 2, HIDDEN_DIM)       # fusion[0]
    cw1, cb1 = linear(keys[5], HIDDEN_DIM, HIDDEN_DIM // 2)   # classifier[0]
    cw2, cb2 = linear(keys[6], HIDDEN_DIM // 2, NUM_CLASSES,
                      bias_fill=0.1)                          # classifier[-1], bias = 0.1
    kw1, kb1 = linear(keys[7], HIDDEN_DIM, HIDDEN_DIM // 2)   # confidence_estimator[0]
    kw2, kb2 = linear(keys[8], HIDDEN_DIM // 2, 1)            # confidence_estimator[3]
    return [aw1, ab1, aw2, ab2, ow1, ob1, ow2, ob2,
            fw, fb, cw1, cb1, cw2, cb2, kw1, kb1, kw2, kb2]


def pack_params(params):
    """Pack all 18 parameter tensors into ONE (40, 768) weight+bias slab."""
    (aw1, ab1, aw2, ab2, ow1, ob1, ow2, ob2,
     fw, fb, cw1, cb1, cw2, cb2, kw1, kb1, kw2, kb2) = params
    D, H, Dh, Hh = INPUT_DIM, HIDDEN_DIM, INPUT_DIM // 2, HIDDEN_DIM // 2

    W = jnp.zeros((_SLAB_ROWS, _W_LANES), jnp.float32)
    # weights
    W = W.at[0:D, _OFF_W1:_OFF_W1 + Dh].set(aw1)
    W = W.at[0:D, _OFF_W1 + Dh:_OFF_W1 + D].set(ow1)
    W = W.at[0:Dh, _OFF_W2 + 0:_OFF_W2 + 1].set(aw2)          # block-diag scores
    W = W.at[Dh:D, _OFF_W2 + 1:_OFF_W2 + 2].set(ow2)
    W = W.at[0:D, _OFF_FWA:_OFF_FWA + H].set(fw[0:D, :])      # fusion aspect half
    W = W.at[0:D, _OFF_FWO:_OFF_FWO + H].set(fw[D:2 * D, :])  # fusion opinion half
    W = W.at[0:H, _OFF_CK1:_OFF_CK1 + Hh].set(cw1)
    W = W.at[0:H, _OFF_CK1 + Hh:_OFF_CK1 + H].set(kw1)
    W = W.at[0:Hh, _OFF_OUT:_OFF_OUT + NUM_CLASSES].set(cw2)  # block-diag head
    W = W.at[Hh:H, _OFF_OUT + NUM_CLASSES:_OFF_OUT + NUM_CLASSES + 1].set(kw2)
    # biases (extra sublane rows of the same slab)
    W = W.at[_ROW_B1, 0:Dh].set(ab1[0])
    W = W.at[_ROW_B1, Dh:D].set(ob1[0])
    W = W.at[_ROW_B2, 0:1].set(ab2[0])
    W = W.at[_ROW_B2, 1:2].set(ob2[0])
    W = W.at[_ROW_FB, 0:H].set(fb[0])
    W = W.at[_ROW_BCK, 0:Hh].set(cb1[0])
    W = W.at[_ROW_BCK, Hh:H].set(kb1[0])
    W = W.at[_ROW_BOUT, 0:NUM_CLASSES].set(cb2[0])
    W = W.at[_ROW_BOUT, NUM_CLASSES:NUM_CLASSES + 1].set(kb2[0])
    return W


def _choose_tb(batch):
    # sublane-full batch tiles; larger tiles amortize per-grid-step overhead.
    # Blocks stay tiny (<1 MiB) so they fit v7x's 64 MiB VMEM with big margin.
    for tb in (256, 128, 64, 32, 16, 8):
        if batch >= tb:
            return tb
    return 8


def aspect_opinion_joint_classifier(hidden_states, attention_mask, w_slab):
    """Returns (sentiment_logits [B, 3], confidence [B, 1])."""
    B, S, D = hidden_states.shape
    assert D == INPUT_DIM
    assert S % 8 == 0, "seq is kept sublane-tile aligned so in-kernel reshapes are free"
    mask3 = attention_mask.astype(jnp.float32).reshape(B, S, 1)

    TB = _choose_tb(B)
    Bp = pl.cdiv(B, TB) * TB
    if Bp != B:  # pad batch so every tile (incl. the output store) is sublane-full
        hidden_states = jnp.pad(hidden_states, ((0, Bp - B), (0, 0), (0, 0)))
        mask3 = jnp.pad(mask3, ((0, Bp - B), (0, 0), (0, 0)))

    out = pl.pallas_call(
        classifier_kernel,
        out_shape=jax.ShapeDtypeStruct((Bp, _OUT_LANES), jnp.float32),
        grid=(Bp // TB,),
        in_specs=[
            pl.BlockSpec((TB, S, D), lambda i: (i, 0, 0)),        # activations (tiled)
            pl.BlockSpec((TB, S, 1), lambda i: (i, 0, 0)),        # mask (tiled)
            pl.BlockSpec((_SLAB_ROWS, _W_LANES), lambda i: (0, 0)),  # params (resident)
        ],
        out_specs=pl.BlockSpec((TB, _OUT_LANES), lambda i: (i, 0)),
        compiler_params=pltpu.CompilerParams(
            dimension_semantics=("parallel",)),  # megacore sharding on v7x
    )(hidden_states, mask3, w_slab)

    logits = out[:B, 0:NUM_CLASSES]
    conf = out[:B, NUM_CLASSES:NUM_CLASSES + 1]
    return logits, conf


# TODO(synk): _apply_sentiment_rules (tokenizer-dependent string/rule logits
# adjustment) and the try/except uniform-logits fallback paths have no Pallas
# equivalent; the kernel covers the tensor forward path only.

if __name__ == "__main__":
    key = jax.random.PRNGKey(0)
    k_hs, k_params = jax.random.split(key)

    hidden_states = jax.random.normal(k_hs, (BATCH, SEQ, INPUT_DIM), jnp.float32)
    # second example has two padding positions to exercise masking
    attention_mask = jnp.array(
        [[1.0] * SEQ,
         [1.0] * (SEQ - 2) + [0.0, 0.0]], dtype=jnp.float32)

    params = make_params(k_params)
    w_slab = pack_params(params)

    logits, conf = aspect_opinion_joint_classifier(
        hidden_states, attention_mask, w_slab)
    jax.block_until_ready((logits, conf))

    assert logits.shape == (BATCH, NUM_CLASSES)
    assert conf.shape == (BATCH, 1)
    print("KERNEL_OK")
</pallas_src>

<mosaic_0001>
module attributes {stable_mosaic.version = 11 : i64} {
  func.func @classifier_kernel(%arg0: i32, %arg1: memref<8x8x32xf32, #tpu.memory_space<vmem>>, %arg2: memref<8x8x1xf32, #tpu.memory_space<vmem>>, %arg3: memref<40x768xf32, #tpu.memory_space<vmem>>, %arg4: memref<8x128xf32, #tpu.memory_space<vmem>>) attributes {dimension_semantics = [#tpu.dimension_semantics<parallel>], iteration_bounds = array<i64: 1>, scalar_prefetch = 0 : i64, scratch_operands = 0 : i64, tpu.core_type = #tpu.core_type<tc>, window_params = [{transform_indices = @transform_0, window_bounds = array<i64: 8, 8, 32>}, {transform_indices = @transform_1, window_bounds = array<i64: 8, 8, 1>}, {pipeline_mode = #tpu.pipeline_mode<synchronous>, transform_indices = @transform_2, window_bounds = array<i64: 40, 768>}, {transform_indices = @transform_3, window_bounds = array<i64: 8, 128>}]} {
    %c0 = arith.constant 0 : index
    %c0_0 = arith.constant 0 : index
    %c0_1 = arith.constant 0 : index
    %0 = vector.load %arg1[%c0, %c0_0, %c0_1] : memref<8x8x32xf32, #tpu.memory_space<vmem>>, vector<8x8x32xf32>
    %1 = vector.shape_cast %0 : vector<8x8x32xf32> to vector<64x32xf32>
    %c0_2 = arith.constant 0 : index
    %c0_3 = arith.constant 0 : index
    %c0_4 = arith.constant 0 : index
    %2 = vector.load %arg2[%c0_2, %c0_3, %c0_4] : memref<8x8x1xf32, #tpu.memory_space<vmem>>, vector<8x8x1xf32>
    %c0_5 = arith.constant 0 : index
    %c0_6 = arith.constant 0 : index
    %3 = vector.load %arg3[%c0_5, %c0_6] : memref<40x768xf32, #tpu.memory_space<vmem>>, vector<32x32xf32>
    %c32 = arith.constant 32 : index
    %c0_7 = arith.constant 0 : index
    %4 = vector.load %arg3[%c32, %c0_7] : memref<40x768xf32, #tpu.memory_space<vmem>>, vector<1x32xf32>
    %cst = arith.constant dense<0.000000e+00> : vector<64x32xf32>
    %5 = tpu.matmul %1, %3, %cst {dimension_numbers = #tpu.dot_dimension_numbers<[1], [0], [0], [1], [0, 0, 1, 1], [], []>} : vector<64x32xf32>, vector<32x32xf32>, vector<64x32xf32> -> vector<64x32xf32>
    %6 = vector.broadcast %4 : vector<1x32xf32> to vector<64x32xf32>
    %7 = arith.addf %5, %6 : vector<64x32xf32>
    %8 = math.tanh %7 : vector<64x32xf32>
    %c0_8 = arith.constant 0 : index
    %c128 = arith.constant 128 : index
    %9 = vector.load %arg3[%c0_8, %c128] : memref<40x768xf32, #tpu.memory_space<vmem>>, vector<32x2xf32>
    %c33 = arith.constant 33 : index
    %c0_9 = arith.constant 0 : index
    %10 = vector.load %arg3[%c33, %c0_9] : memref<40x768xf32, #tpu.memory_space<vmem>>, vector<1x2xf32>
    %cst_10 = arith.constant dense<0.000000e+00> : vector<64x2xf32>
    %11 = tpu.matmul %8, %9, %cst_10 {dimension_numbers = #tpu.dot_dimension_numbers<[1], [0], [0], [1], [0, 0, 1, 1], [], []>} : vector<64x32xf32>, vector<32x2xf32>, vector<64x2xf32> -> vector<64x2xf32>
    %12 = vector.broadcast %10 : vector<1x2xf32> to vector<64x2xf32>
    %13 = arith.addf %11, %12 : vector<64x2xf32>
    %14 = vector.shape_cast %13 : vector<64x2xf32> to vector<8x8x2xf32>
    %cst_11 = arith.constant 0.000000e+00 : f32
    %15 = vector.broadcast %cst_11 : f32 to vector<8x8x1xf32>
    %16 = arith.cmpf oeq, %2, %15 : vector<8x8x1xf32>
    %cst_12 = arith.constant -1.000000e+10 : f32
    %17 = vector.shape_cast %16 : vector<8x8x1xi1> to vector<8x8x1xi1>
    %18 = vector.broadcast %17 : vector<8x8x1xi1> to vector<8x8x2xi1>
    %19 = vector.broadcast %cst_12 : f32 to vector<8x8x2xf32>
    %20 = arith.select %18, %19, %14 : vector<8x8x2xi1>, vector<8x8x2xf32>
    %cst_13 = arith.constant dense<0xFF800000> : vector<8x2xf32>
    %21 = vector.multi_reduction <maximumf>, %20, %cst_13 [1] : vector<8x8x2xf32> to vector<8x2xf32>
    %22 = vector.shape_cast %21 : vector<8x2xf32> to vector<8x1x2xf32>
    %23 = vector.broadcast %22 : vector<8x1x2xf32> to vector<8x8x2xf32>
    %24 = arith.subf %20, %23 : vector<8x8x2xf32>
    %25 = math.exp %24 : vector<8x8x2xf32>
    %cst_14 = arith.constant dense<0.000000e+00> : vector<8x2xf32>
    %26 = vector.multi_reduction <add>, %25, %cst_14 [1] : vector<8x8x2xf32> to vector<8x2xf32>
    %27 = vector.shape_cast %26 : vector<8x2xf32> to vector<8x1x2xf32>
    %28 = vector.broadcast %27 : vector<8x1x2xf32> to vector<8x8x2xf32>
    %29 = arith.divf %25, %28 : vector<8x8x2xf32>
    %cst_15 = arith.constant dense<0.000000e+00> : vector<8x2xf32>
    %30 = vector.multi_reduction <add>, %29, %cst_15 [1] : vector<8x8x2xf32> to vector<8x2xf32>
    %31 = vector.shape_cast %30 : vector<8x2xf32> to vector<8x1x2xf32>
    %cst_16 = arith.constant dense<0.000000e+00> : vector<8x1xf32>
    %32 = vector.multi_reduction <add>, %2, %cst_16 [1] : vector<8x8x1xf32> to vector<8x1xf32>
    %33 = vector.shape_cast %32 : vector<8x1xf32> to vector<8x1x1xf32>
    %cst_17 = arith.constant 9.99999997E-7 : f32
    %34 = vector.broadcast %cst_17 : f32 to vector<8x1x1xf32>
    %35 = arith.maximumf %33, %34 : vector<8x1x1xf32>
    %36 = vector.broadcast %35 : vector<8x1x1xf32> to vector<8x8x1xf32>
    %37 = arith.divf %2, %36 : vector<8x8x1xf32>
    %cst_18 = arith.constant 9.99999997E-7 : f32
    %38 = vector.broadcast %cst_18 : f32 to vector<8x1x2xf32>
    %39 = arith.cmpf ogt, %31, %38 : vector<8x1x2xf32>
    %40 = vector.shape_cast %39 : vector<8x1x2xi1> to vector<8x1x2xi1>
    %41 = vector.broadcast %40 : vector<8x1x2xi1> to vector<8x8x2xi1>
    %42 = vector.shape_cast %37 : vector<8x8x1xf32> to vector<8x8x1xf32>
    %43 = vector.broadcast %42 : vector<8x8x1xf32> to vector<8x8x2xf32>
    %44 = arith.select %41, %29, %43 : vector<8x8x2xi1>, vector<8x8x2xf32>
    "tpu.trace_start"() <{level = 10 : i32, message = "bsk,bsd->bkd"}> : () -> ()
    %cst_19 = arith.constant dense<0.000000e+00> : vector<8x2x32xf32>
    %45 = tpu.matmul %44, %0, %cst_19 {dimension_numbers = #tpu.dot_dimension_numbers<[1], [1], [2], [2], [0, 0, 0, 2, 1, 2], [0], [0]>} : vector<8x8x2xf32>, vector<8x8x32xf32>, vector<8x2x32xf32> -> vector<8x2x32xf32>
    "tpu.trace_stop"() : () -> ()
    %46 = arith.cmpf one, %45, %45 : vector<8x2x32xf32>
    %cst_20 = arith.constant 0.000000e+00 : f32
    %47 = vector.broadcast %cst_20 : f32 to vector<8x2x32xf32>
    %48 = arith.select %46, %47, %45 : vector<8x2x32xi1>, vector<8x2x32xf32>
    %cst_21 = arith.constant 0x7F800000 : f32
    %49 = vector.broadcast %cst_21 : f32 to vector<8x2x32xf32>
    %50 = arith.cmpf oeq, %48, %49 : vector<8x2x32xf32>
    %cst_22 = arith.constant 3.40282347E+38 : f32
    %51 = vector.broadcast %cst_22 : f32 to vector<8x2x32xf32>
    %52 = arith.select %50, %51, %48 : vector<8x2x32xi1>, vector<8x2x32xf32>
    %cst_23 = arith.constant 0xFF800000 : f32
    %53 = vector.broadcast %cst_23 : f32 to vector<8x2x32xf32>
    %54 = arith.cmpf oeq, %52, %53 : vector<8x2x32xf32>
    %cst_24 = arith.constant -3.40282347E+38 : f32
    %55 = vector.broadcast %cst_24 : f32 to vector<8x2x32xf32>
    %56 = arith.select %54, %55, %52 : vector<8x2x32xi1>, vector<8x2x32xf32>
    %57 = vector.extract_strided_slice %56 {offsets = [0, 0, 0], sizes = [8, 1, 32], strides = [1, 1, 1]} : vector<8x2x32xf32> to vector<8x1x32xf32>
    %58 = vector.shape_cast %57 : vector<8x1x32xf32> to vector<8x32xf32>
    %59 = vector.extract_strided_slice %56 {offsets = [0, 1, 0], sizes = [8, 1, 32], strides = [1, 1, 1]} : vector<8x2x32xf32> to vector<8x1x32xf32>
    %60 = vector.shape_cast %59 : vector<8x1x32xf32> to vector<8x32xf32>
    %c0_25 = arith.constant 0 : index
    %c256 = arith.constant 256 : index
    %61 = vector.load %arg3[%c0_25, %c256] : memref<40x768xf32, #tpu.memory_space<vmem>>, vector<32x32xf32>
    %c0_26 = arith.constant 0 : index
    %c384 = arith.constant 384 : index
    %62 = vector.load %arg3[%c0_26, %c384] : memref<40x768xf32, #tpu.memory_space<vmem>>, vector<32x32xf32>
    %c34 = arith.constant 34 : index
    %c0_27 = arith.constant 0 : index
    %63 = vector.load %arg3[%c34, %c0_27] : memref<40x768xf32, #tpu.memory_space<vmem>>, vector<1x32xf32>
    %cst_28 = arith.constant dense<0.000000e+00> : vector<8x32xf32>
    %64 = tpu.matmul %58, %61, %cst_28 {dimension_numbers = #tpu.dot_dimension_numbers<[1], [0], [0], [1], [0, 0, 1, 1], [], []>} : vector<8x32xf32>, vector<32x32xf32>, vector<8x32xf32> -> vector<8x32xf32>
    %cst_29 = arith.constant dense<0.000000e+00> : vector<8x32xf32>
    %65 = tpu.matmul %60, %62, %cst_29 {dimension_numbers = #tpu.dot_dimension_numbers<[1], [0], [0], [1], [0, 0, 1, 1], [], []>} : vector<8x32xf32>, vector<32x32xf32>, vector<8x32xf32> -> vector<8x32xf32>
    %66 = arith.addf %64, %65 : vector<8x32xf32>
    %67 = vector.broadcast %63 : vector<1x32xf32> to vector<8x32xf32>
    %68 = arith.addf %66, %67 : vector<8x32xf32>
    %cst_30 = arith.constant 5.000000e-01 : f32
    %69 = vector.broadcast %cst_30 : f32 to vector<8x32xf32>
    %70 = arith.mulf %69, %68 : vector<8x32xf32>
    %cst_31 = arith.constant 1.41421354 : f32
    %71 = vector.broadcast %cst_31 : f32 to vector<8x32xf32>
    %72 = arith.divf %68, %71 : vector<8x32xf32>
    %73 = math.erf %72 : vector<8x32xf32>
    %cst_32 = arith.constant 1.000000e+00 : f32
    %74 = vector.broadcast %cst_32 : f32 to vector<8x32xf32>
    %75 = arith.addf %74, %73 : vector<8x32xf32>
    %76 = arith.mulf %70, %75 : vector<8x32xf32>
    %c0_33 = arith.constant 0 : index
    %c512 = arith.constant 512 : index
    %77 = vector.load %arg3[%c0_33, %c512] : memref<40x768xf32, #tpu.memory_space<vmem>>, vector<32x32xf32>
    %c35 = arith.constant 35 : index
    %c0_34 = arith.constant 0 : index
    %78 = vector.load %arg3[%c35, %c0_34] : memref<40x768xf32, #tpu.memory_space<vmem>>, vector<1x32xf32>
    %cst_35 = arith.constant dense<0.000000e+00> : vector<8x32xf32>
    %79 = tpu.matmul %76, %77, %cst_35 {dimension_numbers = #tpu.dot_dimension_numbers<[1], [0], [0], [1], [0, 0, 1, 1], [], []>} : vector<8x32xf32>, vector<32x32xf32>, vector<8x32xf32> -> vector<8x32xf32>
    %80 = vector.broadcast %78 : vector<1x32xf32> to vector<8x32xf32>
    %81 = arith.addf %79, %80 : vector<8x32xf32>
    %cst_36 = arith.constant 5.000000e-01 : f32
    %82 = vector.broadcast %cst_36 : f32 to vector<8x32xf32>
    %83 = arith.mulf %82, %81 : vector<8x32xf32>
    %cst_37 = arith.constant 1.41421354 : f32
    %84 = vector.broadcast %cst_37 : f32 to vector<8x32xf32>
    %85 = arith.divf %81, %84 : vector<8x32xf32>
    %86 = math.erf %85 : vector<8x32xf32>
    %cst_38 = arith.constant 1.000000e+00 : f32
    %87 = vector.broadcast %cst_38 : f32 to vector<8x32xf32>
    %88 = arith.addf %87, %86 : vector<8x32xf32>
    %89 = arith.mulf %83, %88 : vector<8x32xf32>
    %c0_39 = arith.constant 0 : index
    %c640 = arith.constant 640 : index
    %90 = vector.load %arg3[%c0_39, %c640] : memref<40x768xf32, #tpu.memory_space<vmem>>, vector<32x128xf32>
    %c36 = arith.constant 36 : index
    %c0_40 = arith.constant 0 : index
    %91 = vector.load %arg3[%c36, %c0_40] : memref<40x768xf32, #tpu.memory_space<vmem>>, vector<1x128xf32>
    %cst_41 = arith.constant dense<0.000000e+00> : vector<8x128xf32>
    %92 = tpu.matmul %89, %90, %cst_41 {dimension_numbers = #tpu.dot_dimension_numbers<[1], [0], [0], [1], [0, 0, 1, 1], [], []>} : vector<8x32xf32>, vector<32x128xf32>, vector<8x128xf32> -> vector<8x128xf32>
    %93 = vector.broadcast %91 : vector<1x128xf32> to vector<8x128xf32>
    %94 = arith.addf %92, %93 : vector<8x128xf32>
    %95 = tpu.iota {dimensions = array<i32: 1>} : vector<8x128xi32>
    %c3_i32 = arith.constant 3 : i32
    %96 = vector.broadcast %c3_i32 : i32 to vector<8x128xi32>
    %97 = arith.cmpi eq, %95, %96 : vector<8x128xi32>
    %98 = arith.negf %94 : vector<8x128xf32>
    %99 = math.exp %98 : vector<8x128xf32>
    %cst_42 = arith.constant 1.000000e+00 : f32
    %100 = vector.broadcast %cst_42 : f32 to vector<8x128xf32>
    %101 = arith.addf %100, %99 : vector<8x128xf32>
    %102 = arith.divf %100, %101 : vector<8x128xf32>
    %103 = arith.select %97, %102, %94 : vector<8x128xi1>, vector<8x128xf32>
    %c0_43 = arith.constant 0 : index
    %c0_44 = arith.constant 0 : index
    %104 = vector.load %arg4[%c0_43, %c0_44] : memref<8x128xf32, #tpu.memory_space<vmem>>, vector<8x128xf32>
    tpu.vector_store %arg4[%c0_43, %c0_44], %103 {strides = array<i32>} : memref<8x128xf32, #tpu.memory_space<vmem>>, vector<8x128xf32>,
    return
  }
  func.func @transform_0(%arg0: i32) -> (i32, i32, i32) {
    %c0_i32 = arith.constant 0 : i32
    %c0_i32_0 = arith.constant 0 : i32
    %c0_i32_1 = arith.constant 0 : i32
    return %arg0, %c0_i32, %c0_i32_0 : i32, i32, i32
  }
  func.func @transform_1(%arg0: i32) -> (i32, i32, i32) {
    %c0_i32 = arith.constant 0 : i32
    %c0_i32_0 = arith.constant 0 : i32
    %c0_i32_1 = arith.constant 0 : i32
    return %arg0, %c0_i32, %c0_i32_0 : i32, i32, i32
  }
  func.func @transform_2(%arg0: i32) -> (i32, i32) {
    %c0_i32 = arith.constant 0 : i32
    %c0_i32_0 = arith.constant 0 : i32
    %c0_i32_1 = arith.constant 0 : i32
    return %c0_i32, %c0_i32_0 : i32, i32
  }
  func.func @transform_3(%arg0: i32) -> (i32, i32) {
    %c0_i32 = arith.constant 0 : i32
    %c0_i32_0 = arith.constant 0 : i32
    return %arg0, %c0_i32 : i32, i32
  }
}

</mosaic_0001>

<llo_original>
// kernel: tpu_custom_call.1
$region0: #{tpu_custom_call.1}
  #allocation0 [shape = 'u32[]', space=smem, size = 0x4, offset = 0x4, fixed_abs, tag = 'smem constant byte address 0x4 - core index']
  #allocation1 [shape = 'u32[144,128]{1,0:T(1,128)}', space=vmem, size = 0x12000, scoped, tag = 'internal scratch']
  %s0 = inlined_call_operand.vmem [shape: f32[8,8,32], index: 0, kind: input, shape index: {}]
  %s1 = inlined_call_operand.vmem [shape: f32[8,8,1], index: 1, kind: input, shape index: {}]
  %s2 = inlined_call_operand.hbm [shape: f32[40,768], index: 2, kind: input, shape index: {}]
  %s3 = inlined_call_operand.hbm [shape: f32[8,128], index: 3, kind: output, shape index: {}]
  %s4 = sld [smem:[#allocation0]]
  $region26: #{tpu_custom_call.1} parent=0
    _
  %s6 = ssub.s32 1, %s4
  %s7 = scalar_select 0, %s6, %s4
  $region1: #{tpu_custom_call.1} parent=0
    #allocation2 [shape = 'u8[122880]{0}', space=vmem, size = 0x1e000, scoped, tag = 'input window, operand 2, single buffered']
    #allocation3 [shape = 's32[1]{0}', space=sflag, size = 0x4, scoped, tag = 'scoped memory for tpu_custom_call.1']
    #allocation4 [shape = 's32[1]{0}', space=sflag, size = 0x4, scoped, tag = 'scoped memory for tpu_custom_call.1']
    #allocation5 [shape = 'u8[4096]{0}', space=vmem, size = 0x1000, scoped, tag = 'output window, operand 0, single buffered']
    %8 = vsyncpa [#allocation3], 0
    %9 = vsyncpa [#allocation4], 0
    // Predicated region
    $region2: #{tpu_custom_call.1} parent=1 // pred_check
      _
    $region3: #{tpu_custom_call.1} parent=1 // pred_check_branch
      %11 = sbr.rel (0) target = $region5
    $region4: #{tpu_custom_call.1} parent=1 // pred_region
      _
    $region5: #{tpu_custom_call.1} parent=1 // pred_fallthru
      _
    // Predicated region
    $region6: #{tpu_custom_call.1} parent=1 // pred_check
      _
    $region7: #{tpu_custom_call.1} parent=1 // pred_check_branch
      %13 = sbr.rel (0) target = $region9
    $region8: #{tpu_custom_call.1} parent=1 // pred_region
      _
    $region9: #{tpu_custom_call.1} parent=1 // pred_fallthru
      _
    // Predicated region
    $region10: #{tpu_custom_call.1} parent=1 // pred_check
      _
    $region11: #{tpu_custom_call.1} parent=1 // pred_check_branch
      %15 = sbr.rel (0) target = $region13
    $region12: #{tpu_custom_call.1} parent=1 // pred_region
      %s17 = ssub.s32 3840, 3840
      %18 = vsyncadd [#allocation3], %s17
      %s19 = sshll.u32 [#allocation2], 4
      %s20 = int_to_ptr.vmem [resolvable:$true] %s19
      %25 = dma.hbm_to_vmem [thread:$0]  %s2, 3840, %s20, [#allocation3], 768, 768, 48
    $region13: #{tpu_custom_call.1} parent=1 // pred_fallthru
      _
    // Predicated region
    $region14: #{tpu_custom_call.1} parent=1 // pred_check
      _
    $region15: #{tpu_custom_call.1} parent=1 // pred_check_branch
      %27 = sbr.rel (0) target = $region17
    $region16: #{tpu_custom_call.1} parent=1 // pred_region
      %28 = dma.done [#allocation3], 3840
    $region17: #{tpu_custom_call.1} parent=1 // pred_fallthru
      _
    %v29 = vld [vmem:[%s0] sm:$0xff]
    %v30 = vld [vmem:[%s0 + $0x8] sm:$0xff]
    %v31 = vld [vmem:[%s0 + $0x10] sm:$0xff]
    %v32 = vld [vmem:[%s0 + $0x18] sm:$0xff]
    %v33 = vld [vmem:[%s0 + $0x20] sm:$0xff]
    %v34 = vld [vmem:[%s0 + $0x28] sm:$0xff]
    %v35 = vld [vmem:[%s0 + $0x30] sm:$0xff]
    %v36 = vld [vmem:[%s0 + $0x38] sm:$0xff]
    %v37 = vld [vmem:[%s1] sm:$0xff]
    %v38 = vld [vmem:[%s1 + $0x8] sm:$0xff]
    %v39 = vld [vmem:[%s1 + $0x10] sm:$0xff]
    %v40 = vld [vmem:[%s1 + $0x18] sm:$0xff]
    %v41 = vld [vmem:[%s1 + $0x20] sm:$0xff]
    %v42 = vld [vmem:[%s1 + $0x28] sm:$0xff]
    %v43 = vld [vmem:[%s1 + $0x30] sm:$0xff]
    %v44 = vld [vmem:[%s1 + $0x38] sm:$0xff]
    %v45 = vld [vmem:[#allocation2] sm:$0xff]
    %v46 = vld [vmem:[#allocation2 + $0x30] sm:$0xff]
    %v47 = vld [vmem:[#allocation2 + $0x60] sm:$0xff]
    %v48 = vld [vmem:[#allocation2 + $0x90] sm:$0xff]
    %v49 = vld [vmem:[#allocation2 + $0xc0] ss:$0 sm:$0xff]
    %vm50 = vcmask 261120
    %v52 = vsel %vm50, %v29, 0
    %v55 = vsel %vm50, %v30, 0
    %v58 = vsel %vm50, %v31, 0
    %v61 = vsel %vm50, %v32, 0
    %v64 = vsel %vm50, %v33, 0
    %v67 = vsel %vm50, %v34, 0
    %v70 = vsel %vm50, %v35, 0
    %v73 = vsel %vm50, %v36, 0
    %75 = vmatprep.subr.mxu0 0.0
    %76 = vmatpush1.msra.mxu0 0.0
    %77 = vmatprep.subr.mxu0 0.0
    %78 = vmatpush1.msra.mxu0 0.0
    %79 = vmatprep.subr.mxu0 0.0
    %80 = vmatpush1.msra.mxu0 0.0
    %81 = vmatprep.subr.mxu0 0.0
    %82 = vmatpush1.msra.mxu0 0.0
    %83 = vmatprep.subr.mxu0 0.0
    %84 = vmatpush1.msra.mxu0 0.0
    %85 = vmatprep.subr.mxu0 0.0
    %86 = vmatpush1.msra.mxu0 0.0
    %87 = vmatprep.subr.mxu0 0.0
    %88 = vmatpush1.msra.mxu0 0.0
    %89 = vmatprep.subr.mxu0 0.0
    %90 = vmatpush1.msra.mxu0 0.0
    %91 = vmatprep.subr.mxu0 0.0
    %92 = vmatpush1.msra.mxu0 0.0
    %93 = vmatprep.subr.mxu0 0.0
    %94 = vmatpush1.msra.mxu0 0.0
    %95 = vmatprep.subr.mxu0 0.0
    %96 = vmatpush1.msra.mxu0 0.0
    %97 = vmatprep.subr.mxu0 0.0
    %98 = vmatpush1.msra.mxu0 0.0
    %99 = vmatprep.subr.mxu0 0.0
    %100 = vmatpush1.msra.mxu0 %v48
    %101 = vmatprep.subr.mxu0 0.0
    %102 = vmatpush1.msra.mxu0 %v47
    %103 = vmatprep.subr.mxu0 0.0
    %104 = vmatpush1.msra.mxu0 %v46
    %105 = vmatprep.subr.mxu0 0.0
    %106 = vmatpush1.msra.mxu0 %v45
    %107 = vmatprep.subr.mxu0 0.0
    %108 = vmatpush2.msra.mxu0 0.0
    %109 = vmatprep.subr.mxu0 0.0
    %110 = vmatpush2.msra.mxu0 0.0
    %111 = vmatprep.subr.mxu0 0.0
    %112 = vmatpush2.msra.mxu0 0.0
    %113 = vmatprep.subr.mxu0 0.0
    %114 = vmatpush2.msra.mxu0 0.0
    %115 = vmatprep.subr.mxu0 0.0
    %116 = vmatpush2.msra.mxu0 0.0
    %117 = vmatprep.subr.mxu0 0.0
    %118 = vmatpush2.msra.mxu0 0.0
    %119 = vmatprep.subr.mxu0 0.0
    %120 = vmatpush2.msra.mxu0 0.0
    %121 = vmatprep.subr.mxu0 0.0
    %122 = vmatpush2.msra.mxu0 0.0
    %123 = vmatprep.subr.mxu0 0.0
    %124 = vmatpush2.msra.mxu0 0.0
    %125 = vmatprep.subr.mxu0 0.0
    %126 = vmatpush2.msra.mxu0 0.0
    %127 = vmatprep.subr.mxu0 0.0
    %128 = vmatpush2.msra.mxu0 0.0
    %129 = vmatprep.subr.mxu0 0.0
    %130 = vmatpush2.msra.mxu0 0.0
    %131 = vmatprep.subr.mxu0 0.0
    %132 = vmatpush2.msra.mxu0 0.0
    %133 = vmatprep.subr.mxu0 0.0
    %134 = vmatpush2.msra.mxu0 0.0
    %135 = vmatprep.subr.mxu0 0.0
    %136 = vmatpush2.msra.mxu0 0.0
    %137 = vmatprep.subr.mxu0 0.0
    %138 = vmatpush2.msra.mxu0 0.0
    %139 = vmatprep.mubr.f32.mxu0 0.0
    %140 = vmatmul.mubr.f32.gmra.mxu0 %v52
    %v141 = vpop.f32.mrf.mxu0
    %v142 = vadd.f32 %v49, %v141
    %v143 = vpop.f32.mrf.mxu0
    %144 = vmatprep.mubr.f32.mxu0 0.0
    %145 = vmatmul.mubr.f32.gmra.mxu0 %v55
    %v146 = vpop.f32.mrf.mxu0
    %v147 = vadd.f32 %v49, %v146
    %v148 = vpop.f32.mrf.mxu0
    %149 = vmatprep.mubr.f32.mxu0 0.0
    %150 = vmatmul.mubr.f32.gmra.mxu0 %v58
    %v151 = vpop.f32.mrf.mxu0
    %v152 = vadd.f32 %v49, %v151
    %v153 = vpop.f32.mrf.mxu0
    %154 = vmatprep.mubr.f32.mxu0 0.0
    %155 = vmatmul.mubr.f32.gmra.mxu0 %v61
    %v156 = vpop.f32.mrf.mxu0
    %v157 = vadd.f32 %v49, %v156
    %v158 = vpop.f32.mrf.mxu0
    %159 = vmatprep.mubr.f32.mxu0 0.0
    %160 = vmatmul.mubr.f32.gmra.mxu0 %v64
    %v161 = vpop.f32.mrf.mxu0
    %v162 = vadd.f32 %v49, %v161
    %v163 = vpop.f32.mrf.mxu0
    %164 = vmatprep.mubr.f32.mxu0 0.0
    %165 = vmatmul.mubr.f32.gmra.mxu0 %v67
    %v166 = vpop.f32.mrf.mxu0
    %v167 = vadd.f32 %v49, %v166
    %v168 = vpop.f32.mrf.mxu0
    %169 = vmatprep.mubr.f32.mxu0 0.0
    %170 = vmatmul.mubr.f32.gmra.mxu0 %v70
    %v171 = vpop.f32.mrf.mxu0
    %v172 = vadd.f32 %v49, %v171
    %v173 = vpop.f32.mrf.mxu0
    %174 = vmatprep.mubr.f32.mxu0 0.0
    %175 = vmatmul.mubr.f32.gmra.mxu0 %v73
    %v176 = vpop.f32.mrf.mxu0
    %v177 = vadd.f32 %v49, %v176
    %v178 = vpop.f32.mrf.mxu0
    %179 = vdwg.mxu0
    %v180 = vtanh.pop %v142
    %v181 = vtanh.pop %v147
    %v182 = vtanh.pop %v152
    %v183 = vtanh.pop %v157
    %v184 = vtanh.pop %v162
    %v185 = vtanh.pop %v167
    %v186 = vtanh.pop %v172
    %v187 = vtanh.pop %v177
    %v188 = vld [vmem:[#allocation2 + $0x8] sm:$0xff]
    %v189 = vld [vmem:[#allocation2 + $0x38] sm:$0xff]
    %v190 = vld [vmem:[#allocation2 + $0x68] sm:$0xff]
    %v191 = vld [vmem:[#allocation2 + $0x98] sm:$0xff]
    %v192 = vld [vmem:[#allocation2 + $0xc1] ss:$0 sm:$0xff]
    %v194 = vsel %vm50, %v180, 0
    %v197 = vsel %vm50, %v181, 0
    %v200 = vsel %vm50, %v182, 0
    %v203 = vsel %vm50, %v183, 0
    %v206 = vsel %vm50, %v184, 0
    %v209 = vsel %vm50, %v185, 0
    %v212 = vsel %vm50, %v186, 0
    %v215 = vsel %vm50, %v187, 0
    %217 = vmatprep.subr.mxu0 0.0
    %218 = vmatpush1.msra.mxu0 0.0
    %219 = vmatprep.subr.mxu0 0.0
    %220 = vmatpush1.msra.mxu0 0.0
    %221 = vmatprep.subr.mxu0 0.0
    %222 = vmatpush1.msra.mxu0 0.0
    %223 = vmatprep.subr.mxu0 0.0
    %224 = vmatpush1.msra.mxu0 0.0
    %225 = vmatprep.subr.mxu0 0.0
    %226 = vmatpush1.msra.mxu0 0.0
    %227 = vmatprep.subr.mxu0 0.0
    %228 = vmatpush1.msra.mxu0 0.0
    %229 = vmatprep.subr.mxu0 0.0
    %230 = vmatpush1.msra.mxu0 0.0
    %231 = vmatprep.subr.mxu0 0.0
    %232 = vmatpush1.msra.mxu0 0.0
    %233 = vmatprep.subr.mxu0 0.0
    %234 = vmatpush1.msra.mxu0 0.0
    %235 = vmatprep.subr.mxu0 0.0
    %236 = vmatpush1.msra.mxu0 0.0
    %237 = vmatprep.subr.mxu0 0.0
    %238 = vmatpush1.msra.mxu0 0.0
    %239 = vmatprep.subr.mxu0 0.0
    %240 = vmatpush1.msra.mxu0 0.0
    %241 = vmatprep.subr.mxu0 0.0
    %242 = vmatpush1.msra.mxu0 %v191
    %243 = vmatprep.subr.mxu0 0.0
    %244 = vmatpush1.msra.mxu0 %v190
    %245 = vmatprep.subr.mxu0 0.0
    %246 = vmatpush1.msra.mxu0 %v189
    %247 = vmatprep.subr.mxu0 0.0
    %248 = vmatpush1.msra.mxu0 %v188
    %249 = vmatprep.subr.mxu0 0.0
    %250 = vmatpush2.msra.mxu0 0.0
    %251 = vmatprep.subr.mxu0 0.0
    %252 = vmatpush2.msra.mxu0 0.0
    %253 = vmatprep.subr.mxu0 0.0
    %254 = vmatpush2.msra.mxu0 0.0
    %255 = vmatprep.subr.mxu0 0.0
    %256 = vmatpush2.msra.mxu0 0.0
    %257 = vmatprep.subr.mxu0 0.0
    %258 = vmatpush2.msra.mxu0 0.0
    %259 = vmatprep.subr.mxu0 0.0
    %260 = vmatpush2.msra.mxu0 0.0
    %261 = vmatprep.subr.mxu0 0.0
    %262 = vmatpush2.msra.mxu0 0.0
    %263 = vmatprep.subr.mxu0 0.0
    %264 = vmatpush2.msra.mxu0 0.0
    %265 = vmatprep.subr.mxu0 0.0
    %266 = vmatpush2.msra.mxu0 0.0
    %267 = vmatprep.subr.mxu0 0.0
    %268 = vmatpush2.msra.mxu0 0.0
    %269 = vmatprep.subr.mxu0 0.0
    %270 = vmatpush2.msra.mxu0 0.0
    %271 = vmatprep.subr.mxu0 0.0
    %272 = vmatpush2.msra.mxu0 0.0
    %273 = vmatprep.subr.mxu0 0.0
    %274 = vmatpush2.msra.mxu0 0.0
    %275 = vmatprep.subr.mxu0 0.0
    %276 = vmatpush2.msra.mxu0 0.0
    %277 = vmatprep.subr.mxu0 0.0
    %278 = vmatpush2.msra.mxu0 0.0
    %279 = vmatprep.subr.mxu0 0.0
    %280 = vmatpush2.msra.mxu0 0.0
    %281 = vmatprep.mubr.f32.mxu0 0.0
    %282 = vmatmul.mubr.f32.gmra.mxu0 %v194
    %v283 = vpop.f32.mrf.mxu0
    %v284 = vadd.f32 %v192, %v283
    %v285 = vpop.f32.mrf.mxu0
    %286 = vmatprep.mubr.f32.mxu0 0.0
    %287 = vmatmul.mubr.f32.gmra.mxu0 %v197
    %v288 = vpop.f32.mrf.mxu0
    %v289 = vadd.f32 %v192, %v288
    %v290 = vpop.f32.mrf.mxu0
    %291 = vmatprep.mubr.f32.mxu0 0.0
    %292 = vmatmul.mubr.f32.gmra.mxu0 %v200
    %v293 = vpop.f32.mrf.mxu0
    %v294 = vadd.f32 %v192, %v293
    %v295 = vpop.f32.mrf.mxu0
    %296 = vmatprep.mubr.f32.mxu0 0.0
    %297 = vmatmul.mubr.f32.gmra.mxu0 %v203
    %v298 = vpop.f32.mrf.mxu0
    %v299 = vadd.f32 %v192, %v298
    %v300 = vpop.f32.mrf.mxu0
    %301 = vmatprep.mubr.f32.mxu0 0.0
    %302 = vmatmul.mubr.f32.gmra.mxu0 %v206
    %v303 = vpop.f32.mrf.mxu0
    %v304 = vadd.f32 %v192, %v303
    %v305 = vpop.f32.mrf.mxu0
    %306 = vmatprep.mubr.f32.mxu0 0.0
    %307 = vmatmul.mubr.f32.gmra.mxu0 %v209
    %v308 = vpop.f32.mrf.mxu0
    %v309 = vadd.f32 %v192, %v308
    %v310 = vpop.f32.mrf.mxu0
    %311 = vmatprep.mubr.f32.mxu0 0.0
    %312 = vmatmul.mubr.f32.gmra.mxu0 %v212
    %v313 = vpop.f32.mrf.mxu0
    %v314 = vadd.f32 %v192, %v313
    %v315 = vpop.f32.mrf.mxu0
    %316 = vmatprep.mubr.f32.mxu0 0.0
    %317 = vmatmul.mubr.f32.gmra.mxu0 %v215
    %v318 = vpop.f32.mrf.mxu0
    %v319 = vadd.f32 %v192, %v318
    %v320 = vpop.f32.mrf.mxu0
    %321 = vdwg.mxu0
    %vm322 = vcmp.eq.f32.partialorder %v37, 0.0
    %vm323 = vcmp.eq.f32.partialorder %v38, 0.0
    %vm324 = vcmp.eq.f32.partialorder %v39, 0.0
    %vm325 = vcmp.eq.f32.partialorder %v40, 0.0
    %vm326 = vcmp.eq.f32.partialorder %v41, 0.0
    %vm327 = vcmp.eq.f32.partialorder %v42, 0.0
    %vm328 = vcmp.eq.f32.partialorder %v43, 0.0
    %vm329 = vcmp.eq.f32.partialorder %v44, 0.0
    %v330 = vsel %vm322, 1, 0
    %v331 = vsel %vm323, 1, 0
    %v332 = vsel %vm324, 1, 0
    %v333 = vsel %vm325, 1, 0
    %v334 = vsel %vm326, 1, 0
    %v335 = vsel %vm327, 1, 0
    %v336 = vsel %vm328, 1, 0
    %v337 = vsel %vm329, 1, 0
    %338 = vset.pattern.permute.xlu0 0
    %339 = vperm.xlu0 %338, %v330
    %v340 = vpop.permute.xlu0 %339
    %341 = vset.pattern.permute.xlu0 0
    %342 = vperm.xlu0 %341, %v331
    %v343 = vpop.permute.xlu0 %342
    %344 = vset.pattern.permute.xlu0 0
    %345 = vperm.xlu0 %344, %v332
    %v346 = vpop.permute.xlu0 %345
    %347 = vset.pattern.permute.xlu0 0
    %348 = vperm.xlu0 %347, %v333
    %v349 = vpop.permute.xlu0 %348
    %350 = vset.pattern.permute.xlu0 0
    %351 = vperm.xlu0 %350, %v334
    %v352 = vpop.permute.xlu0 %351
    %353 = vset.pattern.permute.xlu0 0
    %354 = vperm.xlu0 %353, %v335
    %v355 = vpop.permute.xlu0 %354
    %356 = vset.pattern.permute.xlu0 0
    %357 = vperm.xlu0 %356, %v336
    %v358 = vpop.permute.xlu0 %357
    %359 = vset.pattern.permute.xlu0 0
    %360 = vperm.xlu0 %359, %v337
    %v361 = vpop.permute.xlu0 %360
    %vm362 = vcmp.eq.s32.totalorder %v340, 1
    %vm363 = vcmp.eq.s32.totalorder %v343, 1
    %vm364 = vcmp.eq.s32.totalorder %v346, 1
    %vm365 = vcmp.eq.s32.totalorder %v349, 1
    %vm366 = vcmp.eq.s32.totalorder %v352, 1
    %vm367 = vcmp.eq.s32.totalorder %v355, 1
    %vm368 = vcmp.eq.s32.totalorder %v358, 1
    %vm369 = vcmp.eq.s32.totalorder %v361, 1
    %v370 = vsel %vm362, -1e+10, %v284
    %v371 = vsel %vm363, -1e+10, %v289
    %v372 = vsel %vm364, -1e+10, %v294
    %v373 = vsel %vm365, -1e+10, %v299
    %v374 = vsel %vm366, -1e+10, %v304
    %v375 = vsel %vm367, -1e+10, %v309
    %v376 = vsel %vm368, -1e+10, %v314
    %v377 = vsel %vm369, -1e+10, %v319
    %vm378 = vcmask 15360
    %v379 = vsel %vm378, %v370, -inf
    %v380 = vrot.slane %v379, 4
    %v381 = vmax.f32 %v379, %v380
    %v382 = vrot.slane %v381, 2
    %v383 = vmax.f32 %v381, %v382
    %v384 = vrot.slane %v383, 1
    %v385 = vmax.f32 %v383, %v384
    %v386 = vsel %vm378, %v371, -inf
    %v387 = vrot.slane %v386, 4
    %v388 = vmax.f32 %v386, %v387
    %v389 = vrot.slane %v388, 2
    %v390 = vmax.f32 %v388, %v389
    %v391 = vrot.slane %v390, 1
    %v392 = vmax.f32 %v390, %v391
    %v393 = vsel %vm378, %v372, -inf
    %v394 = vrot.slane %v393, 4
    %v395 = vmax.f32 %v393, %v394
    %v396 = vrot.slane %v395, 2
    %v397 = vmax.f32 %v395, %v396
    %v398 = vrot.slane %v397, 1
    %v399 = vmax.f32 %v397, %v398
    %v400 = vsel %vm378, %v373, -inf
    %v401 = vrot.slane %v400, 4
    %v402 = vmax.f32 %v400, %v401
    %v403 = vrot.slane %v402, 2
    %v404 = vmax.f32 %v402, %v403
    %v405 = vrot.slane %v404, 1
    %v406 = vmax.f32 %v404, %v405
    %v407 = vsel %vm378, %v374, -inf
    %v408 = vrot.slane %v407, 4
    %v409 = vmax.f32 %v407, %v408
    %v410 = vrot.slane %v409, 2
    %v411 = vmax.f32 %v409, %v410
    %v412 = vrot.slane %v411, 1
    %v413 = vmax.f32 %v411, %v412
    %v414 = vsel %vm378, %v375, -inf
    %v415 = vrot.slane %v414, 4
    %v416 = vmax.f32 %v414, %v415
    %v417 = vrot.slane %v416, 2
    %v418 = vmax.f32 %v416, %v417
    %v419 = vrot.slane %v418, 1
    %v420 = vmax.f32 %v418, %v419
    %v421 = vsel %vm378, %v376, -inf
    %v422 = vrot.slane %v421, 4
    %v423 = vmax.f32 %v421, %v422
    %v424 = vrot.slane %v423, 2
    %v425 = vmax.f32 %v423, %v424
    %v426 = vrot.slane %v425, 1
    %v427 = vmax.f32 %v425, %v426
    %v428 = vsel %vm378, %v377, -inf
    %v429 = vrot.slane %v428, 4
    %v430 = vmax.f32 %v428, %v429
    %v431 = vrot.slane %v430, 2
    %v432 = vmax.f32 %v430, %v431
    %v433 = vrot.slane %v432, 1
    %v434 = vmax.f32 %v432, %v433
    %v435 = vsub.f32 %v370, %v385
    %v436 = vsub.f32 %v371, %v392
    %v437 = vsub.f32 %v372, %v399
    %v438 = vsub.f32 %v373, %v406
    %v439 = vsub.f32 %v374, %v413
    %v440 = vsub.f32 %v375, %v420
    %v441 = vsub.f32 %v376, %v427
    %v442 = vsub.f32 %v377, %v434
    %v443 = vmul.f32 %v435, 1.442695
    %v444 = vpow.pop %v443
    %v445 = vmul.f32 %v436, 1.442695
    %v446 = vpow.pop %v445
    %v447 = vmul.f32 %v437, 1.442695
    %v448 = vpow.pop %v447
    %v449 = vmul.f32 %v438, 1.442695
    %v450 = vpow.pop %v449
    %v451 = vmul.f32 %v439, 1.442695
    %v452 = vpow.pop %v451
    %v453 = vmul.f32 %v440, 1.442695
    %v454 = vpow.pop %v453
    %v455 = vmul.f32 %v441, 1.442695
    %v456 = vpow.pop %v455
    %v457 = vmul.f32 %v442, 1.442695
    %v458 = vpow.pop %v457
    %v459 = vsel %vm378, %v444, 0.0
    %v460 = vrot.slane %v459, 4
    %v461 = vadd.f32 %v459, %v460
    %v462 = vrot.slane %v461, 2
    %v463 = vadd.f32 %v461, %v462
    %v464 = vrot.slane %v463, 1
    %v465 = vadd.f32 %v463, %v464
    %v466 = vsel %vm378, %v446, 0.0
    %v467 = vrot.slane %v466, 4
    %v468 = vadd.f32 %v466, %v467
    %v469 = vrot.slane %v468, 2
    %v470 = vadd.f32 %v468, %v469
    %v471 = vrot.slane %v470, 1
    %v472 = vadd.f32 %v470, %v471
    %v473 = vsel %vm378, %v448, 0.0
    %v474 = vrot.slane %v473, 4
    %v475 = vadd.f32 %v473, %v474
    %v476 = vrot.slane %v475, 2
    %v477 = vadd.f32 %v475, %v476
    %v478 = vrot.slane %v477, 1
    %v479 = vadd.f32 %v477, %v478
    %v480 = vsel %vm378, %v450, 0.0
    %v481 = vrot.slane %v480, 4
    %v482 = vadd.f32 %v480, %v481
    %v483 = vrot.slane %v482, 2
    %v484 = vadd.f32 %v482, %v483
    %v485 = vrot.slane %v484, 1
    %v486 = vadd.f32 %v484, %v485
    %v487 = vsel %vm378, %v452, 0.0
    %v488 = vrot.slane %v487, 4
    %v489 = vadd.f32 %v487, %v488
    %v490 = vrot.slane %v489, 2
    %v491 = vadd.f32 %v489, %v490
    %v492 = vrot.slane %v491, 1
    %v493 = vadd.f32 %v491, %v492
    %v494 = vsel %vm378, %v454, 0.0
    %v495 = vrot.slane %v494, 4
    %v496 = vadd.f32 %v494, %v495
    %v497 = vrot.slane %v496, 2
    %v498 = vadd.f32 %v496, %v497
    %v499 = vrot.slane %v498, 1
    %v500 = vadd.f32 %v498, %v499
    %v501 = vsel %vm378, %v456, 0.0
    %v502 = vrot.slane %v501, 4
    %v503 = vadd.f32 %v501, %v502
    %v504 = vrot.slane %v503, 2
    %v505 = vadd.f32 %v503, %v504
    %v506 = vrot.slane %v505, 1
    %v507 = vadd.f32 %v505, %v506
    %v508 = vsel %vm378, %v458, 0.0
    %v509 = vrot.slane %v508, 4
    %v510 = vadd.f32 %v508, %v509
    %v511 = vrot.slane %v510, 2
    %v512 = vadd.f32 %v510, %v511
    %v513 = vrot.slane %v512, 1
    %v514 = vadd.f32 %v512, %v513
    %v515 = vrcp.pop %v465
    %v516 = vmul.f32 %v444, %v515
    %v517 = vrcp.pop %v472
    %v518 = vmul.f32 %v446, %v517
    %v519 = vrcp.pop %v479
    %v520 = vmul.f32 %v448, %v519
    %v521 = vrcp.pop %v486
    %v522 = vmul.f32 %v450, %v521
    %v523 = vrcp.pop %v493
    %v524 = vmul.f32 %v452, %v523
    %v525 = vrcp.pop %v500
    %v526 = vmul.f32 %v454, %v525
    %v527 = vrcp.pop %v507
    %v528 = vmul.f32 %v456, %v527
    %v529 = vrcp.pop %v514
    %v530 = vmul.f32 %v458, %v529
    %v531 = vsel %vm378, %v516, 0.0
    %v532 = vrot.slane %v531, 4
    %v533 = vadd.f32 %v531, %v532
    %v534 = vrot.slane %v533, 2
    %v535 = vadd.f32 %v533, %v534
    %v536 = vrot.slane %v535, 1
    %v537 = vadd.f32 %v535, %v536
    %v538 = vsel %vm378, %v518, 0.0
    %v539 = vrot.slane %v538, 4
    %v540 = vadd.f32 %v538, %v539
    %v541 = vrot.slane %v540, 2
    %v542 = vadd.f32 %v540, %v541
    %v543 = vrot.slane %v542, 1
    %v544 = vadd.f32 %v542, %v543
    %v545 = vsel %vm378, %v520, 0.0
    %v546 = vrot.slane %v545, 4
    %v547 = vadd.f32 %v545, %v546
    %v548 = vrot.slane %v547, 2
    %v549 = vadd.f32 %v547, %v548
    %v550 = vrot.slane %v549, 1
    %v551 = vadd.f32 %v549, %v550
    %v552 = vsel %vm378, %v522, 0.0
    %v553 = vrot.slane %v552, 4
    %v554 = vadd.f32 %v552, %v553
    %v555 = vrot.slane %v554, 2
    %v556 = vadd.f32 %v554, %v555
    %v557 = vrot.slane %v556, 1
    %v558 = vadd.f32 %v556, %v557
    %v559 = vsel %vm378, %v524, 0.0
    %v560 = vrot.slane %v559, 4
    %v561 = vadd.f32 %v559, %v560
    %v562 = vrot.slane %v561, 2
    %v563 = vadd.f32 %v561, %v562
    %v564 = vrot.slane %v563, 1
    %v565 = vadd.f32 %v563, %v564
    %v566 = vsel %vm378, %v526, 0.0
    %v567 = vrot.slane %v566, 4
    %v568 = vadd.f32 %v566, %v567
    %v569 = vrot.slane %v568, 2
    %v570 = vadd.f32 %v568, %v569
    %v571 = vrot.slane %v570, 1
    %v572 = vadd.f32 %v570, %v571
    %v573 = vsel %vm378, %v528, 0.0
    %v574 = vrot.slane %v573, 4
    %v575 = vadd.f32 %v573, %v574
    %v576 = vrot.slane %v575, 2
    %v577 = vadd.f32 %v575, %v576
    %v578 = vrot.slane %v577, 1
    %v579 = vadd.f32 %v577, %v578
    %v580 = vsel %vm378, %v530, 0.0
    %v581 = vrot.slane %v580, 4
    %v582 = vadd.f32 %v580, %v581
    %v583 = vrot.slane %v582, 2
    %v584 = vadd.f32 %v582, %v583
    %v585 = vrot.slane %v584, 1
    %v586 = vadd.f32 %v584, %v585
    %vm587 = vcmask 7168
    %v588 = vsel %vm587, %v37, 0.0
    %v589 = vrot.slane %v588, 4
    %v590 = vadd.f32 %v588, %v589
    %v591 = vrot.slane %v590, 2
    %v592 = vadd.f32 %v590, %v591
    %v593 = vrot.slane %v592, 1
    %v594 = vadd.f32 %v592, %v593
    %v595 = vsel %vm587, %v38, 0.0
    %v596 = vrot.slane %v595, 4
    %v597 = vadd.f32 %v595, %v596
    %v598 = vrot.slane %v597, 2
    %v599 = vadd.f32 %v597, %v598
    %v600 = vrot.slane %v599, 1
    %v601 = vadd.f32 %v599, %v600
    %v602 = vsel %vm587, %v39, 0.0
    %v603 = vrot.slane %v602, 4
    %v604 = vadd.f32 %v602, %v603
    %v605 = vrot.slane %v604, 2
    %v606 = vadd.f32 %v604, %v605
    %v607 = vrot.slane %v606, 1
    %v608 = vadd.f32 %v606, %v607
    %v609 = vsel %vm587, %v40, 0.0
    %v610 = vrot.slane %v609, 4
    %v611 = vadd.f32 %v609, %v610
    %v612 = vrot.slane %v611, 2
    %v613 = vadd.f32 %v611, %v612
    %v614 = vrot.slane %v613, 1
    %v615 = vadd.f32 %v613, %v614
    %v616 = vsel %vm587, %v41, 0.0
    %v617 = vrot.slane %v616, 4
    %v618 = vadd.f32 %v616, %v617
    %v619 = vrot.slane %v618, 2
    %v620 = vadd.f32 %v618, %v619
    %v621 = vrot.slane %v620, 1
    %v622 = vadd.f32 %v620, %v621
    %v623 = vsel %vm587, %v42, 0.0
    %v624 = vrot.slane %v623, 4
    %v625 = vadd.f32 %v623, %v624
    %v626 = vrot.slane %v625, 2
    %v627 = vadd.f32 %v625, %v626
    %v628 = vrot.slane %v627, 1
    %v629 = vadd.f32 %v627, %v628
    %v630 = vsel %vm587, %v43, 0.0
    %v631 = vrot.slane %v630, 4
    %v632 = vadd.f32 %v630, %v631
    %v633 = vrot.slane %v632, 2
    %v634 = vadd.f32 %v632, %v633
    %v635 = vrot.slane %v634, 1
    %v636 = vadd.f32 %v634, %v635
    %v637 = vsel %vm587, %v44, 0.0
    %v638 = vrot.slane %v637, 4
    %v639 = vadd.f32 %v637, %v638
    %v640 = vrot.slane %v639, 2
    %v641 = vadd.f32 %v639, %v640
    %v642 = vrot.slane %v641, 1
    %v643 = vadd.f32 %v641, %v642
    %v644 = vmax.f32 %v594, 1e-06
    %v645 = vmax.f32 %v601, 1e-06
    %v646 = vmax.f32 %v608, 1e-06
    %v647 = vmax.f32 %v615, 1e-06
    %v648 = vmax.f32 %v622, 1e-06
    %v649 = vmax.f32 %v629, 1e-06
    %v650 = vmax.f32 %v636, 1e-06
    %v651 = vmax.f32 %v643, 1e-06
    %v652 = vrcp.pop %v644
    %v653 = vmul.f32 %v37, %v652
    %v654 = vrcp.pop %v645
    %v655 = vmul.f32 %v38, %v654
    %v656 = vrcp.pop %v646
    %v657 = vmul.f32 %v39, %v656
    %v658 = vrcp.pop %v647
    %v659 = vmul.f32 %v40, %v658
    %v660 = vrcp.pop %v648
    %v661 = vmul.f32 %v41, %v660
    %v662 = vrcp.pop %v649
    %v663 = vmul.f32 %v42, %v662
    %v664 = vrcp.pop %v650
    %v665 = vmul.f32 %v43, %v664
    %v666 = vrcp.pop %v651
    %v667 = vmul.f32 %v44, %v666
    %vm668 = vcmp.gt.f32.partialorder %v537, 1e-06
    %vm669 = vcmp.gt.f32.partialorder %v544, 1e-06
    %vm670 = vcmp.gt.f32.partialorder %v551, 1e-06
    %vm671 = vcmp.gt.f32.partialorder %v558, 1e-06
    %vm672 = vcmp.gt.f32.partialorder %v565, 1e-06
    %vm673 = vcmp.gt.f32.partialorder %v572, 1e-06
    %vm674 = vcmp.gt.f32.partialorder %v579, 1e-06
    %vm675 = vcmp.gt.f32.partialorder %v586, 1e-06
    %v676 = vsel %vm668, 1, 0
    %v677 = vsel %vm669, 1, 0
    %v678 = vsel %vm670, 1, 0
    %v679 = vsel %vm671, 1, 0
    %v680 = vsel %vm672, 1, 0
    %v681 = vsel %vm673, 1, 0
    %v682 = vsel %vm674, 1, 0
    %v683 = vsel %vm675, 1, 0
    %vm684 = vcmp.eq.s32.totalorder %v676, 1
    %vm685 = vcmp.eq.s32.totalorder %v677, 1
    %vm686 = vcmp.eq.s32.totalorder %v678, 1
    %vm687 = vcmp.eq.s32.totalorder %v679, 1
    %vm688 = vcmp.eq.s32.totalorder %v680, 1
    %vm689 = vcmp.eq.s32.totalorder %v681, 1
    %vm690 = vcmp.eq.s32.totalorder %v682, 1
    %vm691 = vcmp.eq.s32.totalorder %v683, 1
    %693 = vset.pattern.permute.xlu0 0
    %694 = vperm.xlu0 %693, %v653
    %v695 = vpop.permute.xlu0 %694
    %698 = vset.pattern.permute.xlu0 0
    %699 = vperm.xlu0 %698, %v655
    %v700 = vpop.permute.xlu0 %699
    %703 = vset.pattern.permute.xlu0 0
    %704 = vperm.xlu0 %703, %v657
    %v705 = vpop.permute.xlu0 %704
    %708 = vset.pattern.permute.xlu0 0
    %709 = vperm.xlu0 %708, %v659
    %v710 = vpop.permute.xlu0 %709
    %713 = vset.pattern.permute.xlu0 0
    %714 = vperm.xlu0 %713, %v661
    %v715 = vpop.permute.xlu0 %714
    %718 = vset.pattern.permute.xlu0 0
    %719 = vperm.xlu0 %718, %v663
    %v720 = vpop.permute.xlu0 %719
    %723 = vset.pattern.permute.xlu0 0
    %724 = vperm.xlu0 %723, %v665
    %v725 = vpop.permute.xlu0 %724
    %728 = vset.pattern.permute.xlu0 0
    %729 = vperm.xlu0 %728, %v667
    %v730 = vpop.permute.xlu0 %729
    %v732 = vsel %vm684, %v516, %v695
    %v733 = vsel %vm685, %v518, %v700
    %v734 = vsel %vm686, %v520, %v705
    %v735 = vsel %vm687, %v522, %v710
    %v736 = vsel %vm688, %v524, %v715
    %v737 = vsel %vm689, %v526, %v720
    %v738 = vsel %vm690, %v528, %v725
    %v739 = vsel %vm691, %v530, %v730
    %740 = vxpose.xlu0.b32.start [1/16] %v732, 128
    %741 = vxpose.xlu0.b32.cont [2/16] 0.0, 128
    %742 = vxpose.xlu0.b32.cont [3/16] 0.0, 128
    %743 = vxpose.xlu0.b32.cont [4/16] 0.0, 128
    %744 = vxpose.xlu0.b32.cont [5/16] 0.0, 128
    %745 = vxpose.xlu0.b32.cont [6/16] 0.0, 128
    %746 = vxpose.xlu0.b32.cont [7/16] 0.0, 128
    %747 = vxpose.xlu0.b32.cont [8/16] 0.0, 128
    %748 = vxpose.xlu0.b32.cont [9/16] 0.0, 128
    %749 = vxpose.xlu0.b32.cont [10/16] 0.0, 128
    %750 = vxpose.xlu0.b32.cont [11/16] 0.0, 128
    %751 = vxpose.xlu0.b32.cont [12/16] 0.0, 128
    %752 = vxpose.xlu0.b32.cont [13/16] 0.0, 128
    %753 = vxpose.xlu0.b32.cont [14/16] 0.0, 128
    %754 = vxpose.xlu0.b32.cont [15/16] 0.0, 128
    %755 = vxpose.xlu0.b32.end [16/16] 0.0, 128
    %v756 = vpop.trf.xlu0
    %v757 = vpop.trf.xlu0
    %v758 = vpop.trf.xlu0
    %v759 = vpop.trf.xlu0
    %v760 = vpop.trf.xlu0
    %v761 = vpop.trf.xlu0
    %v762 = vpop.trf.xlu0
    %v763 = vpop.trf.xlu0
    %v764 = vpop.trf.xlu0
    %v765 = vpop.trf.xlu0
    %v766 = vpop.trf.xlu0
    %v767 = vpop.trf.xlu0
    %v768 = vpop.trf.xlu0
    %v769 = vpop.trf.xlu0
    %v770 = vpop.trf.xlu0
    %v771 = vpop.trf.xlu0
    %vm772 = vcmask 64512
    %v774 = vsel %vm772, %v756, 0
    %776 = vmatprep.subr.mxu0 0.0
    %777 = vmatpush1.msra.mxu0 0.0
    %778 = vmatprep.subr.mxu0 0.0
    %779 = vmatpush1.msra.mxu0 0.0
    %780 = vmatprep.subr.mxu0 0.0
    %781 = vmatpush1.msra.mxu0 0.0
    %782 = vmatprep.subr.mxu0 0.0
    %783 = vmatpush1.msra.mxu0 0.0
    %784 = vmatprep.subr.mxu0 0.0
    %785 = vmatpush1.msra.mxu0 0.0
    %786 = vmatprep.subr.mxu0 0.0
    %787 = vmatpush1.msra.mxu0 0.0
    %788 = vmatprep.subr.mxu0 0.0
    %789 = vmatpush1.msra.mxu0 0.0
    %790 = vmatprep.subr.mxu0 0.0
    %791 = vmatpush1.msra.mxu0 0.0
    %792 = vmatprep.subr.mxu0 0.0
    %793 = vmatpush1.msra.mxu0 0.0
    %794 = vmatprep.subr.mxu0 0.0
    %795 = vmatpush1.msra.mxu0 0.0
    %796 = vmatprep.subr.mxu0 0.0
    %797 = vmatpush1.msra.mxu0 0.0
    %798 = vmatprep.subr.mxu0 0.0
    %799 = vmatpush1.msra.mxu0 0.0
    %800 = vmatprep.subr.mxu0 0.0
    %801 = vmatpush1.msra.mxu0 0.0
    %802 = vmatprep.subr.mxu0 0.0
    %803 = vmatpush1.msra.mxu0 0.0
    %804 = vmatprep.subr.mxu0 0.0
    %805 = vmatpush1.msra.mxu0 0.0
    %806 = vmatprep.subr.mxu0 0.0
    %807 = vmatpush1.msra.mxu0 %v29
    %808 = vmatprep.subr.mxu0 0.0
    %809 = vmatpush2.msra.mxu0 0.0
    %810 = vmatprep.subr.mxu0 0.0
    %811 = vmatpush2.msra.mxu0 0.0
    %812 = vmatprep.subr.mxu0 0.0
    %813 = vmatpush2.msra.mxu0 0.0
    %814 = vmatprep.subr.mxu0 0.0
    %815 = vmatpush2.msra.mxu0 0.0
    %816 = vmatprep.subr.mxu0 0.0
    %817 = vmatpush2.msra.mxu0 0.0
    %818 = vmatprep.subr.mxu0 0.0
    %819 = vmatpush2.msra.mxu0 0.0
    %820 = vmatprep.subr.mxu0 0.0
    %821 = vmatpush2.msra.mxu0 0.0
    %822 = vmatprep.subr.mxu0 0.0
    %823 = vmatpush2.msra.mxu0 0.0
    %824 = vmatprep.subr.mxu0 0.0
    %825 = vmatpush2.msra.mxu0 0.0
    %826 = vmatprep.subr.mxu0 0.0
    %827 = vmatpush2.msra.mxu0 0.0
    %828 = vmatprep.subr.mxu0 0.0
    %829 = vmatpush2.msra.mxu0 0.0
    %830 = vmatprep.subr.mxu0 0.0
    %831 = vmatpush2.msra.mxu0 0.0
    %832 = vmatprep.subr.mxu0 0.0
    %833 = vmatpush2.msra.mxu0 0.0
    %834 = vmatprep.subr.mxu0 0.0
    %835 = vmatpush2.msra.mxu0 0.0
    %836 = vmatprep.subr.mxu0 0.0
    %837 = vmatpush2.msra.mxu0 0.0
    %838 = vmatprep.subr.mxu0 0.0
    %839 = vmatpush2.msra.mxu0 0.0
    %840 = vmatprep.mubr.f32.mxu0 0.0
    %841 = vmatmul.mubr.f32.gmra.mxu0 %v774
    %v842 = vpop.f32.mrf.mxu0
    %v843 = vadd.f32 0.0, %v842
    %v844 = vpop.f32.mrf.mxu0
    %845 = vdwg.mxu0
    %846 = vxpose.xlu0.b32.start [1/16] %v733, 128
    %847 = vxpose.xlu0.b32.cont [2/16] 0.0, 128
    %848 = vxpose.xlu0.b32.cont [3/16] 0.0, 128
    %849 = vxpose.xlu0.b32.cont [4/16] 0.0, 128
    %850 = vxpose.xlu0.b32.cont [5/16] 0.0, 128
    %851 = vxpose.xlu0.b32.cont [6/16] 0.0, 128
    %852 = vxpose.xlu0.b32.cont [7/16] 0.0, 128
    %853 = vxpose.xlu0.b32.cont [8/16] 0.0, 128
    %854 = vxpose.xlu0.b32.cont [9/16] 0.0, 128
    %855 = vxpose.xlu0.b32.cont [10/16] 0.0, 128
    %856 = vxpose.xlu0.b32.cont [11/16] 0.0, 128
    %857 = vxpose.xlu0.b32.cont [12/16] 0.0, 128
    %858 = vxpose.xlu0.b32.cont [13/16] 0.0, 128
    %859 = vxpose.xlu0.b32.cont [14/16] 0.0, 128
    %860 = vxpose.xlu0.b32.cont [15/16] 0.0, 128
    %861 = vxpose.xlu0.b32.end [16/16] 0.0, 128
    %v862 = vpop.trf.xlu0
    %v863 = vpop.trf.xlu0
    %v864 = vpop.trf.xlu0
    %v865 = vpop.trf.xlu0
    %v866 = vpop.trf.xlu0
    %v867 = vpop.trf.xlu0
    %v868 = vpop.trf.xlu0
    %v869 = vpop.trf.xlu0
    %v870 = vpop.trf.xlu0
    %v871 = vpop.trf.xlu0
    %v872 = vpop.trf.xlu0
    %v873 = vpop.trf.xlu0
    %v874 = vpop.trf.xlu0
    %v875 = vpop.trf.xlu0
    %v876 = vpop.trf.xlu0
    %v877 = vpop.trf.xlu0
    %v879 = vsel %vm772, %v862, 0
    %881 = vmatprep.subr.mxu0 0.0
    %882 = vmatpush1.msra.mxu0 0.0
    %883 = vmatprep.subr.mxu0 0.0
    %884 = vmatpush1.msra.mxu0 0.0
    %885 = vmatprep.subr.mxu0 0.0
    %886 = vmatpush1.msra.mxu0 0.0
    %887 = vmatprep.subr.mxu0 0.0
    %888 = vmatpush1.msra.mxu0 0.0
    %889 = vmatprep.subr.mxu0 0.0
    %890 = vmatpush1.msra.mxu0 0.0
    %891 = vmatprep.subr.mxu0 0.0
    %892 = vmatpush1.msra.mxu0 0.0
    %893 = vmatprep.subr.mxu0 0.0
    %894 = vmatpush1.msra.mxu0 0.0
    %895 = vmatprep.subr.mxu0 0.0
    %896 = vmatpush1.msra.mxu0 0.0
    %897 = vmatprep.subr.mxu0 0.0
    %898 = vmatpush1.msra.mxu0 0.0
    %899 = vmatprep.subr.mxu0 0.0
    %900 = vmatpush1.msra.mxu0 0.0
    %901 = vmatprep.subr.mxu0 0.0
    %902 = vmatpush1.msra.mxu0 0.0
    %903 = vmatprep.subr.mxu0 0.0
    %904 = vmatpush1.msra.mxu0 0.0
    %905 = vmatprep.subr.mxu0 0.0
    %906 = vmatpush1.msra.mxu0 0.0
    %907 = vmatprep.subr.mxu0 0.0
    %908 = vmatpush1.msra.mxu0 0.0
    %909 = vmatprep.subr.mxu0 0.0
    %910 = vmatpush1.msra.mxu0 0.0
    %911 = vmatprep.subr.mxu0 0.0
    %912 = vmatpush1.msra.mxu0 %v30
    %913 = vmatprep.subr.mxu0 0.0
    %914 = vmatpush2.msra.mxu0 0.0
    %915 = vmatprep.subr.mxu0 0.0
    %916 = vmatpush2.msra.mxu0 0.0
    %917 = vmatprep.subr.mxu0 0.0
    %918 = vmatpush2.msra.mxu0 0.0
    %919 = vmatprep.subr.mxu0 0.0
    %920 = vmatpush2.msra.mxu0 0.0
    %921 = vmatprep.subr.mxu0 0.0
    %922 = vmatpush2.msra.mxu0 0.0
    %923 = vmatprep.subr.mxu0 0.0
    %924 = vmatpush2.msra.mxu0 0.0
    %925 = vmatprep.subr.mxu0 0.0
    %926 = vmatpush2.msra.mxu0 0.0
    %927 = vmatprep.subr.mxu0 0.0
    %928 = vmatpush2.msra.mxu0 0.0
    %929 = vmatprep.subr.mxu0 0.0
    %930 = vmatpush2.msra.mxu0 0.0
    %931 = vmatprep.subr.mxu0 0.0
    %932 = vmatpush2.msra.mxu0 0.0
    %933 = vmatprep.subr.mxu0 0.0
    %934 = vmatpush2.msra.mxu0 0.0
    %935 = vmatprep.subr.mxu0 0.0
    %936 = vmatpush2.msra.mxu0 0.0
    %937 = vmatprep.subr.mxu0 0.0
    %938 = vmatpush2.msra.mxu0 0.0
    %939 = vmatprep.subr.mxu0 0.0
    %940 = vmatpush2.msra.mxu0 0.0
    %941 = vmatprep.subr.mxu0 0.0
    %942 = vmatpush2.msra.mxu0 0.0
    %943 = vmatprep.subr.mxu0 0.0
    %944 = vmatpush2.msra.mxu0 0.0
    %945 = vmatprep.mubr.f32.mxu0 0.0
    %946 = vmatmul.mubr.f32.gmra.mxu0 %v879
    %v947 = vpop.f32.mrf.mxu0
    %v948 = vadd.f32 0.0, %v947
    %v949 = vpop.f32.mrf.mxu0
    %950 = vdwg.mxu0
    %951 = vxpose.xlu0.b32.start [1/16] %v734, 128
    %952 = vxpose.xlu0.b32.cont [2/16] 0.0, 128
    %953 = vxpose.xlu0.b32.cont [3/16] 0.0, 128
    %954 = vxpose.xlu0.b32.cont [4/16] 0.0, 128
    %955 = vxpose.xlu0.b32.cont [5/16] 0.0, 128
    %956 = vxpose.xlu0.b32.cont [6/16] 0.0, 128
    %957 = vxpose.xlu0.b32.cont [7/16] 0.0, 128
    %958 = vxpose.xlu0.b32.cont [8/16] 0.0, 128
    %959 = vxpose.xlu0.b32.cont [9/16] 0.0, 128
    %960 = vxpose.xlu0.b32.cont [10/16] 0.0, 128
    %961 = vxpose.xlu0.b32.cont [11/16] 0.0, 128
    %962 = vxpose.xlu0.b32.cont [12/16] 0.0, 128
    %963 = vxpose.xlu0.b32.cont [13/16] 0.0, 128
    %964 = vxpose.xlu0.b32.cont [14/16] 0.0, 128
    %965 = vxpose.xlu0.b32.cont [15/16] 0.0, 128
    %966 = vxpose.xlu0.b32.end [16/16] 0.0, 128
    %v967 = vpop.trf.xlu0
    %v968 = vpop.trf.xlu0
    %v969 = vpop.trf.xlu0
    %v970 = vpop.trf.xlu0
    %v971 = vpop.trf.xlu0
    %v972 = vpop.trf.xlu0
    %v973 = vpop.trf.xlu0
    %v974 = vpop.trf.xlu0
    %v975 = vpop.trf.xlu0
    %v976 = vpop.trf.xlu0
    %v977 = vpop.trf.xlu0
    %v978 = vpop.trf.xlu0
    %v979 = vpop.trf.xlu0
    %v980 = vpop.trf.xlu0
    %v981 = vpop.trf.xlu0
    %v982 = vpop.trf.xlu0
    %v984 = vsel %vm772, %v967, 0
    %986 = vmatprep.subr.mxu0 0.0
    %987 = vmatpush1.msra.mxu0 0.0
    %988 = vmatprep.subr.mxu0 0.0
    %989 = vmatpush1.msra.mxu0 0.0
    %990 = vmatprep.subr.mxu0 0.0
    %991 = vmatpush1.msra.mxu0 0.0
    %992 = vmatprep.subr.mxu0 0.0
    %993 = vmatpush1.msra.mxu0 0.0
    %994 = vmatprep.subr.mxu0 0.0
    %995 = vmatpush1.msra.mxu0 0.0
    %996 = vmatprep.subr.mxu0 0.0
    %997 = vmatpush1.msra.mxu0 0.0
    %998 = vmatprep.subr.mxu0 0.0
    %999 = vmatpush1.msra.mxu0 0.0
    %1000 = vmatprep.subr.mxu0 0.0
    %1001 = vmatpush1.msra.mxu0 0.0
    %1002 = vmatprep.subr.mxu0 0.0
    %1003 = vmatpush1.msra.mxu0 0.0
    %1004 = vmatprep.subr.mxu0 0.0
    %1005 = vmatpush1.msra.mxu0 0.0
    %1006 = vmatprep.subr.mxu0 0.0
    %1007 = vmatpush1.msra.mxu0 0.0
    %1008 = vmatprep.subr.mxu0 0.0
    %1009 = vmatpush1.msra.mxu0 0.0
    %1010 = vmatprep.subr.mxu0 0.0
    %1011 = vmatpush1.msra.mxu0 0.0
    %1012 = vmatprep.subr.mxu0 0.0
    %1013 = vmatpush1.msra.mxu0 0.0
    %1014 = vmatprep.subr.mxu0 0.0
    %1015 = vmatpush1.msra.mxu0 0.0
    %1016 = vmatprep.subr.mxu0 0.0
    %1017 = vmatpush1.msra.mxu0 %v31
    %1018 = vmatprep.subr.mxu0 0.0
    %1019 = vmatpush2.msra.mxu0 0.0
    %1020 = vmatprep.subr.mxu0 0.0
    %1021 = vmatpush2.msra.mxu0 0.0
    %1022 = vmatprep.subr.mxu0 0.0
    %1023 = vmatpush2.msra.mxu0 0.0
    %1024 = vmatprep.subr.mxu0 0.0
    %1025 = vmatpush2.msra.mxu0 0.0
    %1026 = vmatprep.subr.mxu0 0.0
    %1027 = vmatpush2.msra.mxu0 0.0
    %1028 = vmatprep.subr.mxu0 0.0
    %1029 = vmatpush2.msra.mxu0 0.0
    %1030 = vmatprep.subr.mxu0 0.0
    %1031 = vmatpush2.msra.mxu0 0.0
    %1032 = vmatprep.subr.mxu0 0.0
    %1033 = vmatpush2.msra.mxu0 0.0
    %1034 = vmatprep.subr.mxu0 0.0
    %1035 = vmatpush2.msra.mxu0 0.0
    %1036 = vmatprep.subr.mxu0 0.0
    %1037 = vmatpush2.msra.mxu0 0.0
    %1038 = vmatprep.subr.mxu0 0.0
    %1039 = vmatpush2.msra.mxu0 0.0
    %1040 = vmatprep.subr.mxu0 0.0
    %1041 = vmatpush2.msra.mxu0 0.0
    %1042 = vmatprep.subr.mxu0 0.0
    %1043 = vmatpush2.msra.mxu0 0.0
    %1044 = vmatprep.subr.mxu0 0.0
    %1045 = vmatpush2.msra.mxu0 0.0
    %1046 = vmatprep.subr.mxu0 0.0
    %1047 = vmatpush2.msra.mxu0 0.0
    %1048 = vmatprep.subr.mxu0 0.0
    %1049 = vmatpush2.msra.mxu0 0.0
    %1050 = vmatprep.mubr.f32.mxu0 0.0
    %1051 = vmatmul.mubr.f32.gmra.mxu0 %v984
    %v1052 = vpop.f32.mrf.mxu0
    %v1053 = vadd.f32 0.0, %v1052
    %v1054 = vpop.f32.mrf.mxu0
    %1055 = vdwg.mxu0
    %1056 = vxpose.xlu0.b32.start [1/16] %v735, 128
    %1057 = vxpose.xlu0.b32.cont [2/16] 0.0, 128
    %1058 = vxpose.xlu0.b32.cont [3/16] 0.0, 128
    %1059 = vxpose.xlu0.b32.cont [4/16] 0.0, 128
    %1060 = vxpose.xlu0.b32.cont [5/16] 0.0, 128
    %1061 = vxpose.xlu0.b32.cont [6/16] 0.0, 128
    %1062 = vxpose.xlu0.b32.cont [7/16] 0.0, 128
    %1063 = vxpose.xlu0.b32.cont [8/16] 0.0, 128
    %1064 = vxpose.xlu0.b32.cont [9/16] 0.0, 128
    %1065 = vxpose.xlu0.b32.cont [10/16] 0.0, 128
    %1066 = vxpose.xlu0.b32.cont [11/16] 0.0, 128
    %1067 = vxpose.xlu0.b32.cont [12/16] 0.0, 128
    %1068 = vxpose.xlu0.b32.cont [13/16] 0.0, 128
    %1069 = vxpose.xlu0.b32.cont [14/16] 0.0, 128
    %1070 = vxpose.xlu0.b32.cont [15/16] 0.0, 128
    %1071 = vxpose.xlu0.b32.end [16/16] 0.0, 128
    %v1072 = vpop.trf.xlu0
    %v1073 = vpop.trf.xlu0
    %v1074 = vpop.trf.xlu0
    %v1075 = vpop.trf.xlu0
    %v1076 = vpop.trf.xlu0
    %v1077 = vpop.trf.xlu0
    %v1078 = vpop.trf.xlu0
    %v1079 = vpop.trf.xlu0
    %v1080 = vpop.trf.xlu0
    %v1081 = vpop.trf.xlu0
    %v1082 = vpop.trf.xlu0
    %v1083 = vpop.trf.xlu0
    %v1084 = vpop.trf.xlu0
    %v1085 = vpop.trf.xlu0
    %v1086 = vpop.trf.xlu0
    %v1087 = vpop.trf.xlu0
    %v1089 = vsel %vm772, %v1072, 0
    %1091 = vmatprep.subr.mxu0 0.0
    %1092 = vmatpush1.msra.mxu0 0.0
    %1093 = vmatprep.subr.mxu0 0.0
    %1094 = vmatpush1.msra.mxu0 0.0
    %1095 = vmatprep.subr.mxu0 0.0
    %1096 = vmatpush1.msra.mxu0 0.0
    %1097 = vmatprep.subr.mxu0 0.0
    %1098 = vmatpush1.msra.mxu0 0.0
    %1099 = vmatprep.subr.mxu0 0.0
    %1100 = vmatpush1.msra.mxu0 0.0
    %1101 = vmatprep.subr.mxu0 0.0
    %1102 = vmatpush1.msra.mxu0 0.0
    %1103 = vmatprep.subr.mxu0 0.0
    %1104 = vmatpush1.msra.mxu0 0.0
    %1105 = vmatprep.subr.mxu0 0.0
    %1106 = vmatpush1.msra.mxu0 0.0
    %1107 = vmatprep.subr.mxu0 0.0
    %1108 = vmatpush1.msra.mxu0 0.0
    %1109 = vmatprep.subr.mxu0 0.0
    %1110 = vmatpush1.msra.mxu0 0.0
    %1111 = vmatprep.subr.mxu0 0.0
    %1112 = vmatpush1.msra.mxu0 0.0
    %1113 = vmatprep.subr.mxu0 0.0
    %1114 = vmatpush1.msra.mxu0 0.0
    %1115 = vmatprep.subr.mxu0 0.0
    %1116 = vmatpush1.msra.mxu0 0.0
    %1117 = vmatprep.subr.mxu0 0.0
    %1118 = vmatpush1.msra.mxu0 0.0
    %1119 = vmatprep.subr.mxu0 0.0
    %1120 = vmatpush1.msra.mxu0 0.0
    %1121 = vmatprep.subr.mxu0 0.0
    %1122 = vmatpush1.msra.mxu0 %v32
    %1123 = vmatprep.subr.mxu0 0.0
    %1124 = vmatpush2.msra.mxu0 0.0
    %1125 = vmatprep.subr.mxu0 0.0
    %1126 = vmatpush2.msra.mxu0 0.0
    %1127 = vmatprep.subr.mxu0 0.0
    %1128 = vmatpush2.msra.mxu0 0.0
    %1129 = vmatprep.subr.mxu0 0.0
    %1130 = vmatpush2.msra.mxu0 0.0
    %1131 = vmatprep.subr.mxu0 0.0
    %1132 = vmatpush2.msra.mxu0 0.0
    %1133 = vmatprep.subr.mxu0 0.0
    %1134 = vmatpush2.msra.mxu0 0.0
    %1135 = vmatprep.subr.mxu0 0.0
    %1136 = vmatpush2.msra.mxu0 0.0
    %1137 = vmatprep.subr.mxu0 0.0
    %1138 = vmatpush2.msra.mxu0 0.0
    %1139 = vmatprep.subr.mxu0 0.0
    %1140 = vmatpush2.msra.mxu0 0.0
    %1141 = vmatprep.subr.mxu0 0.0
    %1142 = vmatpush2.msra.mxu0 0.0
    %1143 = vmatprep.subr.mxu0 0.0
    %1144 = vmatpush2.msra.mxu0 0.0
    %1145 = vmatprep.subr.mxu0 0.0
    %1146 = vmatpush2.msra.mxu0 0.0
    %1147 = vmatprep.subr.mxu0 0.0
    %1148 = vmatpush2.msra.mxu0 0.0
    %1149 = vmatprep.subr.mxu0 0.0
    %1150 = vmatpush2.msra.mxu0 0.0
    %1151 = vmatprep.subr.mxu0 0.0
    %1152 = vmatpush2.msra.mxu0 0.0
    %1153 = vmatprep.subr.mxu0 0.0
    %1154 = vmatpush2.msra.mxu0 0.0
    %1155 = vmatprep.mubr.f32.mxu0 0.0
    %1156 = vmatmul.mubr.f32.gmra.mxu0 %v1089
    %v1157 = vpop.f32.mrf.mxu0
    %v1158 = vadd.f32 0.0, %v1157
    %v1159 = vpop.f32.mrf.mxu0
    %1160 = vdwg.mxu0
    %1161 = vxpose.xlu0.b32.start [1/16] %v736, 128
    %1162 = vxpose.xlu0.b32.cont [2/16] 0.0, 128
    %1163 = vxpose.xlu0.b32.cont [3/16] 0.0, 128
    %1164 = vxpose.xlu0.b32.cont [4/16] 0.0, 128
    %1165 = vxpose.xlu0.b32.cont [5/16] 0.0, 128
    %1166 = vxpose.xlu0.b32.cont [6/16] 0.0, 128
    %1167 = vxpose.xlu0.b32.cont [7/16] 0.0, 128
    %1168 = vxpose.xlu0.b32.cont [8/16] 0.0, 128
    %1169 = vxpose.xlu0.b32.cont [9/16] 0.0, 128
    %1170 = vxpose.xlu0.b32.cont [10/16] 0.0, 128
    %1171 = vxpose.xlu0.b32.cont [11/16] 0.0, 128
    %1172 = vxpose.xlu0.b32.cont [12/16] 0.0, 128
    %1173 = vxpose.xlu0.b32.cont [13/16] 0.0, 128
    %1174 = vxpose.xlu0.b32.cont [14/16] 0.0, 128
    %1175 = vxpose.xlu0.b32.cont [15/16] 0.0, 128
    %1176 = vxpose.xlu0.b32.end [16/16] 0.0, 128
    %v1177 = vpop.trf.xlu0
    %v1178 = vpop.trf.xlu0
    %v1179 = vpop.trf.xlu0
    %v1180 = vpop.trf.xlu0
    %v1181 = vpop.trf.xlu0
    %v1182 = vpop.trf.xlu0
    %v1183 = vpop.trf.xlu0
    %v1184 = vpop.trf.xlu0
    %v1185 = vpop.trf.xlu0
    %v1186 = vpop.trf.xlu0
    %v1187 = vpop.trf.xlu0
    %v1188 = vpop.trf.xlu0
    %v1189 = vpop.trf.xlu0
    %v1190 = vpop.trf.xlu0
    %v1191 = vpop.trf.xlu0
    %v1192 = vpop.trf.xlu0
    %v1194 = vsel %vm772, %v1177, 0
    %1196 = vmatprep.subr.mxu0 0.0
    %1197 = vmatpush1.msra.mxu0 0.0
    %1198 = vmatprep.subr.mxu0 0.0
    %1199 = vmatpush1.msra.mxu0 0.0
    %1200 = vmatprep.subr.mxu0 0.0
    %1201 = vmatpush1.msra.mxu0 0.0
    %1202 = vmatprep.subr.mxu0 0.0
    %1203 = vmatpush1.msra.mxu0 0.0
    %1204 = vmatprep.subr.mxu0 0.0
    %1205 = vmatpush1.msra.mxu0 0.0
    %1206 = vmatprep.subr.mxu0 0.0
    %1207 = vmatpush1.msra.mxu0 0.0
    %1208 = vmatprep.subr.mxu0 0.0
    %1209 = vmatpush1.msra.mxu0 0.0
    %1210 = vmatprep.subr.mxu0 0.0
    %1211 = vmatpush1.msra.mxu0 0.0
    %1212 = vmatprep.subr.mxu0 0.0
    %1213 = vmatpush1.msra.mxu0 0.0
    %1214 = vmatprep.subr.mxu0 0.0
    %1215 = vmatpush1.msra.mxu0 0.0
    %1216 = vmatprep.subr.mxu0 0.0
    %1217 = vmatpush1.msra.mxu0 0.0
    %1218 = vmatprep.subr.mxu0 0.0
    %1219 = vmatpush1.msra.mxu0 0.0
    %1220 = vmatprep.subr.mxu0 0.0
    %1221 = vmatpush1.msra.mxu0 0.0
    %1222 = vmatprep.subr.mxu0 0.0
    %1223 = vmatpush1.msra.mxu0 0.0
    %1224 = vmatprep.subr.mxu0 0.0
    %1225 = vmatpush1.msra.mxu0 0.0
    %1226 = vmatprep.subr.mxu0 0.0
    %1227 = vmatpush1.msra.mxu0 %v33
    %1228 = vmatprep.subr.mxu0 0.0
    %1229 = vmatpush2.msra.mxu0 0.0
    %1230 = vmatprep.subr.mxu0 0.0
    %1231 = vmatpush2.msra.mxu0 0.0
    %1232 = vmatprep.subr.mxu0 0.0
    %1233 = vmatpush2.msra.mxu0 0.0
    %1234 = vmatprep.subr.mxu0 0.0
    %1235 = vmatpush2.msra.mxu0 0.0
    %1236 = vmatprep.subr.mxu0 0.0
    %1237 = vmatpush2.msra.mxu0 0.0
    %1238 = vmatprep.subr.mxu0 0.0
    %1239 = vmatpush2.msra.mxu0 0.0
    %1240 = vmatprep.subr.mxu0 0.0
    %1241 = vmatpush2.msra.mxu0 0.0
    %1242 = vmatprep.subr.mxu0 0.0
    %1243 = vmatpush2.msra.mxu0 0.0
    %1244 = vmatprep.subr.mxu0 0.0
    %1245 = vmatpush2.msra.mxu0 0.0
    %1246 = vmatprep.subr.mxu0 0.0
    %1247 = vmatpush2.msra.mxu0 0.0
    %1248 = vmatprep.subr.mxu0 0.0
    %1249 = vmatpush2.msra.mxu0 0.0
    %1250 = vmatprep.subr.mxu0 0.0
    %1251 = vmatpush2.msra.mxu0 0.0
    %1252 = vmatprep.subr.mxu0 0.0
    %1253 = vmatpush2.msra.mxu0 0.0
    %1254 = vmatprep.subr.mxu0 0.0
    %1255 = vmatpush2.msra.mxu0 0.0
    %1256 = vmatprep.subr.mxu0 0.0
    %1257 = vmatpush2.msra.mxu0 0.0
    %1258 = vmatprep.subr.mxu0 0.0
    %1259 = vmatpush2.msra.mxu0 0.0
    %1260 = vmatprep.mubr.f32.mxu0 0.0
    %1261 = vmatmul.mubr.f32.gmra.mxu0 %v1194
    %v1262 = vpop.f32.mrf.mxu0
    %v1263 = vadd.f32 0.0, %v1262
    %v1264 = vpop.f32.mrf.mxu0
    %1265 = vdwg.mxu0
    %1266 = vxpose.xlu0.b32.start [1/16] %v737, 128
    %1267 = vxpose.xlu0.b32.cont [2/16] 0.0, 128
    %1268 = vxpose.xlu0.b32.cont [3/16] 0.0, 128
    %1269 = vxpose.xlu0.b32.cont [4/16] 0.0, 128
    %1270 = vxpose.xlu0.b32.cont [5/16] 0.0, 128
    %1271 = vxpose.xlu0.b32.cont [6/16] 0.0, 128
    %1272 = vxpose.xlu0.b32.cont [7/16] 0.0, 128
    %1273 = vxpose.xlu0.b32.cont [8/16] 0.0, 128
    %1274 = vxpose.xlu0.b32.cont [9/16] 0.0, 128
    %1275 = vxpose.xlu0.b32.cont [10/16] 0.0, 128
    %1276 = vxpose.xlu0.b32.cont [11/16] 0.0, 128
    %1277 = vxpose.xlu0.b32.cont [12/16] 0.0, 128
    %1278 = vxpose.xlu0.b32.cont [13/16] 0.0, 128
    %1279 = vxpose.xlu0.b32.cont [14/16] 0.0, 128
    %1280 = vxpose.xlu0.b32.cont [15/16] 0.0, 128
    %1281 = vxpose.xlu0.b32.end [16/16] 0.0, 128
    %v1282 = vpop.trf.xlu0
    %v1283 = vpop.trf.xlu0
    %v1284 = vpop.trf.xlu0
    %v1285 = vpop.trf.xlu0
    %v1286 = vpop.trf.xlu0
    %v1287 = vpop.trf.xlu0
    %v1288 = vpop.trf.xlu0
    %v1289 = vpop.trf.xlu0
    %v1290 = vpop.trf.xlu0
    %v1291 = vpop.trf.xlu0
    %v1292 = vpop.trf.xlu0
    %v1293 = vpop.trf.xlu0
    %v1294 = vpop.trf.xlu0
    %v1295 = vpop.trf.xlu0
    %v1296 = vpop.trf.xlu0
    %v1297 = vpop.trf.xlu0
    %v1299 = vsel %vm772, %v1282, 0
    %1301 = vmatprep.subr.mxu0 0.0
    %1302 = vmatpush1.msra.mxu0 0.0
    %1303 = vmatprep.subr.mxu0 0.0
    %1304 = vmatpush1.msra.mxu0 0.0
    %1305 = vmatprep.subr.mxu0 0.0
    %1306 = vmatpush1.msra.mxu0 0.0
    %1307 = vmatprep.subr.mxu0 0.0
    %1308 = vmatpush1.msra.mxu0 0.0
    %1309 = vmatprep.subr.mxu0 0.0
    %1310 = vmatpush1.msra.mxu0 0.0
    %1311 = vmatprep.subr.mxu0 0.0
    %1312 = vmatpush1.msra.mxu0 0.0
    %1313 = vmatprep.subr.mxu0 0.0
    %1314 = vmatpush1.msra.mxu0 0.0
    %1315 = vmatprep.subr.mxu0 0.0
    %1316 = vmatpush1.msra.mxu0 0.0
    %1317 = vmatprep.subr.mxu0 0.0
    %1318 = vmatpush1.msra.mxu0 0.0
    %1319 = vmatprep.subr.mxu0 0.0
    %1320 = vmatpush1.msra.mxu0 0.0
    %1321 = vmatprep.subr.mxu0 0.0
    %1322 = vmatpush1.msra.mxu0 0.0
    %1323 = vmatprep.subr.mxu0 0.0
    %1324 = vmatpush1.msra.mxu0 0.0
    %1325 = vmatprep.subr.mxu0 0.0
    %1326 = vmatpush1.msra.mxu0 0.0
    %1327 = vmatprep.subr.mxu0 0.0
    %1328 = vmatpush1.msra.mxu0 0.0
    %1329 = vmatprep.subr.mxu0 0.0
    %1330 = vmatpush1.msra.mxu0 0.0
    %1331 = vmatprep.subr.mxu0 0.0
    %1332 = vmatpush1.msra.mxu0 %v34
    %1333 = vmatprep.subr.mxu0 0.0
    %1334 = vmatpush2.msra.mxu0 0.0
    %1335 = vmatprep.subr.mxu0 0.0
    %1336 = vmatpush2.msra.mxu0 0.0
    %1337 = vmatprep.subr.mxu0 0.0
    %1338 = vmatpush2.msra.mxu0 0.0
    %1339 = vmatprep.subr.mxu0 0.0
    %1340 = vmatpush2.msra.mxu0 0.0
    %1341 = vmatprep.subr.mxu0 0.0
    %1342 = vmatpush2.msra.mxu0 0.0
    %1343 = vmatprep.subr.mxu0 0.0
    %1344 = vmatpush2.msra.mxu0 0.0
    %1345 = vmatprep.subr.mxu0 0.0
    %1346 = vmatpush2.msra.mxu0 0.0
    %1347 = vmatprep.subr.mxu0 0.0
    %1348 = vmatpush2.msra.mxu0 0.0
    %1349 = vmatprep.subr.mxu0 0.0
    %1350 = vmatpush2.msra.mxu0 0.0
    %1351 = vmatprep.subr.mxu0 0.0
    %1352 = vmatpush2.msra.mxu0 0.0
    %1353 = vmatprep.subr.mxu0 0.0
    %1354 = vmatpush2.msra.mxu0 0.0
    %1355 = vmatprep.subr.mxu0 0.0
    %1356 = vmatpush2.msra.mxu0 0.0
    %1357 = vmatprep.subr.mxu0 0.0
    %1358 = vmatpush2.msra.mxu0 0.0
    %1359 = vmatprep.subr.mxu0 0.0
    %1360 = vmatpush2.msra.mxu0 0.0
    %1361 = vmatprep.subr.mxu0 0.0
    %1362 = vmatpush2.msra.mxu0 0.0
    %1363 = vmatprep.subr.mxu0 0.0
    %1364 = vmatpush2.msra.mxu0 0.0
    %1365 = vmatprep.mubr.f32.mxu0 0.0
    %1366 = vmatmul.mubr.f32.gmra.mxu0 %v1299
    %v1367 = vpop.f32.mrf.mxu0
    %v1368 = vadd.f32 0.0, %v1367
    %v1369 = vpop.f32.mrf.mxu0
    %1370 = vdwg.mxu0
    %1371 = vxpose.xlu0.b32.start [1/16] %v738, 128
    %1372 = vxpose.xlu0.b32.cont [2/16] 0.0, 128
    %1373 = vxpose.xlu0.b32.cont [3/16] 0.0, 128
    %1374 = vxpose.xlu0.b32.cont [4/16] 0.0, 128
    %1375 = vxpose.xlu0.b32.cont [5/16] 0.0, 128
    %1376 = vxpose.xlu0.b32.cont [6/16] 0.0, 128
    %1377 = vxpose.xlu0.b32.cont [7/16] 0.0, 128
    %1378 = vxpose.xlu0.b32.cont [8/16] 0.0, 128
    %1379 = vxpose.xlu0.b32.cont [9/16] 0.0, 128
    %1380 = vxpose.xlu0.b32.cont [10/16] 0.0, 128
    %1381 = vxpose.xlu0.b32.cont [11/16] 0.0, 128
    %1382 = vxpose.xlu0.b32.cont [12/16] 0.0, 128
    %1383 = vxpose.xlu0.b32.cont [13/16] 0.0, 128
    %1384 = vxpose.xlu0.b32.cont [14/16] 0.0, 128
    %1385 = vxpose.xlu0.b32.cont [15/16] 0.0, 128
    %1386 = vxpose.xlu0.b32.end [16/16] 0.0, 128
    %v1387 = vpop.trf.xlu0
    %v1388 = vpop.trf.xlu0
    %v1389 = vpop.trf.xlu0
    %v1390 = vpop.trf.xlu0
    %v1391 = vpop.trf.xlu0
    %v1392 = vpop.trf.xlu0
    %v1393 = vpop.trf.xlu0
    %v1394 = vpop.trf.xlu0
    %v1395 = vpop.trf.xlu0
    %v1396 = vpop.trf.xlu0
    %v1397 = vpop.trf.xlu0
    %v1398 = vpop.trf.xlu0
    %v1399 = vpop.trf.xlu0
    %v1400 = vpop.trf.xlu0
    %v1401 = vpop.trf.xlu0
    %v1402 = vpop.trf.xlu0
    %v1404 = vsel %vm772, %v1387, 0
    %1406 = vmatprep.subr.mxu0 0.0
    %1407 = vmatpush1.msra.mxu0 0.0
    %1408 = vmatprep.subr.mxu0 0.0
    %1409 = vmatpush1.msra.mxu0 0.0
    %1410 = vmatprep.subr.mxu0 0.0
    %1411 = vmatpush1.msra.mxu0 0.0
    %1412 = vmatprep.subr.mxu0 0.0
    %1413 = vmatpush1.msra.mxu0 0.0
    %1414 = vmatprep.subr.mxu0 0.0
    %1415 = vmatpush1.msra.mxu0 0.0
    %1416 = vmatprep.subr.mxu0 0.0
    %1417 = vmatpush1.msra.mxu0 0.0
    %1418 = vmatprep.subr.mxu0 0.0
    %1419 = vmatpush1.msra.mxu0 0.0
    %1420 = vmatprep.subr.mxu0 0.0
    %1421 = vmatpush1.msra.mxu0 0.0
    %1422 = vmatprep.subr.mxu0 0.0
    %1423 = vmatpush1.msra.mxu0 0.0
    %1424 = vmatprep.subr.mxu0 0.0
    %1425 = vmatpush1.msra.mxu0 0.0
    %1426 = vmatprep.subr.mxu0 0.0
    %1427 = vmatpush1.msra.mxu0 0.0
    %1428 = vmatprep.subr.mxu0 0.0
    %1429 = vmatpush1.msra.mxu0 0.0
    %1430 = vmatprep.subr.mxu0 0.0
    %1431 = vmatpush1.msra.mxu0 0.0
    %1432 = vmatprep.subr.mxu0 0.0
    %1433 = vmatpush1.msra.mxu0 0.0
    %1434 = vmatprep.subr.mxu0 0.0
    %1435 = vmatpush1.msra.mxu0 0.0
    %1436 = vmatprep.subr.mxu0 0.0
    %1437 = vmatpush1.msra.mxu0 %v35
    %1438 = vmatprep.subr.mxu0 0.0
    %1439 = vmatpush2.msra.mxu0 0.0
    %1440 = vmatprep.subr.mxu0 0.0
    %1441 = vmatpush2.msra.mxu0 0.0
    %1442 = vmatprep.subr.mxu0 0.0
    %1443 = vmatpush2.msra.mxu0 0.0
    %1444 = vmatprep.subr.mxu0 0.0
    %1445 = vmatpush2.msra.mxu0 0.0
    %1446 = vmatprep.subr.mxu0 0.0
    %1447 = vmatpush2.msra.mxu0 0.0
    %1448 = vmatprep.subr.mxu0 0.0
    %1449 = vmatpush2.msra.mxu0 0.0
    %1450 = vmatprep.subr.mxu0 0.0
    %1451 = vmatpush2.msra.mxu0 0.0
    %1452 = vmatprep.subr.mxu0 0.0
    %1453 = vmatpush2.msra.mxu0 0.0
    %1454 = vmatprep.subr.mxu0 0.0
    %1455 = vmatpush2.msra.mxu0 0.0
    %1456 = vmatprep.subr.mxu0 0.0
    %1457 = vmatpush2.msra.mxu0 0.0
    %1458 = vmatprep.subr.mxu0 0.0
    %1459 = vmatpush2.msra.mxu0 0.0
    %1460 = vmatprep.subr.mxu0 0.0
    %1461 = vmatpush2.msra.mxu0 0.0
    %1462 = vmatprep.subr.mxu0 0.0
    %1463 = vmatpush2.msra.mxu0 0.0
    %1464 = vmatprep.subr.mxu0 0.0
    %1465 = vmatpush2.msra.mxu0 0.0
    %1466 = vmatprep.subr.mxu0 0.0
    %1467 = vmatpush2.msra.mxu0 0.0
    %1468 = vmatprep.subr.mxu0 0.0
    %1469 = vmatpush2.msra.mxu0 0.0
    %1470 = vmatprep.mubr.f32.mxu0 0.0
    %1471 = vmatmul.mubr.f32.gmra.mxu0 %v1404
    %v1472 = vpop.f32.mrf.mxu0
    %v1473 = vadd.f32 0.0, %v1472
    %v1474 = vpop.f32.mrf.mxu0
    %1475 = vdwg.mxu0
    %1476 = vxpose.xlu0.b32.start [1/16] %v739, 128
    %1477 = vxpose.xlu0.b32.cont [2/16] 0.0, 128
    %1478 = vxpose.xlu0.b32.cont [3/16] 0.0, 128
    %1479 = vxpose.xlu0.b32.cont [4/16] 0.0, 128
    %1480 = vxpose.xlu0.b32.cont [5/16] 0.0, 128
    %1481 = vxpose.xlu0.b32.cont [6/16] 0.0, 128
    %1482 = vxpose.xlu0.b32.cont [7/16] 0.0, 128
    %1483 = vxpose.xlu0.b32.cont [8/16] 0.0, 128
    %1484 = vxpose.xlu0.b32.cont [9/16] 0.0, 128
    %1485 = vxpose.xlu0.b32.cont [10/16] 0.0, 128
    %1486 = vxpose.xlu0.b32.cont [11/16] 0.0, 128
    %1487 = vxpose.xlu0.b32.cont [12/16] 0.0, 128
    %1488 = vxpose.xlu0.b32.cont [13/16] 0.0, 128
    %1489 = vxpose.xlu0.b32.cont [14/16] 0.0, 128
    %1490 = vxpose.xlu0.b32.cont [15/16] 0.0, 128
    %1491 = vxpose.xlu0.b32.end [16/16] 0.0, 128
    %v1492 = vpop.trf.xlu0
    %v1493 = vpop.trf.xlu0
    %v1494 = vpop.trf.xlu0
    %v1495 = vpop.trf.xlu0
    %v1496 = vpop.trf.xlu0
    %v1497 = vpop.trf.xlu0
    %v1498 = vpop.trf.xlu0
    %v1499 = vpop.trf.xlu0
    %v1500 = vpop.trf.xlu0
    %v1501 = vpop.trf.xlu0
    %v1502 = vpop.trf.xlu0
    %v1503 = vpop.trf.xlu0
    %v1504 = vpop.trf.xlu0
    %v1505 = vpop.trf.xlu0
    %v1506 = vpop.trf.xlu0
    %v1507 = vpop.trf.xlu0
    %v1509 = vsel %vm772, %v1492, 0
    %1511 = vmatprep.subr.mxu0 0.0
    %1512 = vmatpush1.msra.mxu0 0.0
    %1513 = vmatprep.subr.mxu0 0.0
    %1514 = vmatpush1.msra.mxu0 0.0
    %1515 = vmatprep.subr.mxu0 0.0
    %1516 = vmatpush1.msra.mxu0 0.0
    %1517 = vmatprep.subr.mxu0 0.0
    %1518 = vmatpush1.msra.mxu0 0.0
    %1519 = vmatprep.subr.mxu0 0.0
    %1520 = vmatpush1.msra.mxu0 0.0
    %1521 = vmatprep.subr.mxu0 0.0
    %1522 = vmatpush1.msra.mxu0 0.0
    %1523 = vmatprep.subr.mxu0 0.0
    %1524 = vmatpush1.msra.mxu0 0.0
    %1525 = vmatprep.subr.mxu0 0.0
    %1526 = vmatpush1.msra.mxu0 0.0
    %1527 = vmatprep.subr.mxu0 0.0
    %1528 = vmatpush1.msra.mxu0 0.0
    %1529 = vmatprep.subr.mxu0 0.0
    %1530 = vmatpush1.msra.mxu0 0.0
    %1531 = vmatprep.subr.mxu0 0.0
    %1532 = vmatpush1.msra.mxu0 0.0
    %1533 = vmatprep.subr.mxu0 0.0
    %1534 = vmatpush1.msra.mxu0 0.0
    %1535 = vmatprep.subr.mxu0 0.0
    %1536 = vmatpush1.msra.mxu0 0.0
    %1537 = vmatprep.subr.mxu0 0.0
    %1538 = vmatpush1.msra.mxu0 0.0
    %1539 = vmatprep.subr.mxu0 0.0
    %1540 = vmatpush1.msra.mxu0 0.0
    %1541 = vmatprep.subr.mxu0 0.0
    %1542 = vmatpush1.msra.mxu0 %v36
    %1543 = vmatprep.subr.mxu0 0.0
    %1544 = vmatpush2.msra.mxu0 0.0
    %1545 = vmatprep.subr.mxu0 0.0
    %1546 = vmatpush2.msra.mxu0 0.0
    %1547 = vmatprep.subr.mxu0 0.0
    %1548 = vmatpush2.msra.mxu0 0.0
    %1549 = vmatprep.subr.mxu0 0.0
    %1550 = vmatpush2.msra.mxu0 0.0
    %1551 = vmatprep.subr.mxu0 0.0
    %1552 = vmatpush2.msra.mxu0 0.0
    %1553 = vmatprep.subr.mxu0 0.0
    %1554 = vmatpush2.msra.mxu0 0.0
    %1555 = vmatprep.subr.mxu0 0.0
    %1556 = vmatpush2.msra.mxu0 0.0
    %1557 = vmatprep.subr.mxu0 0.0
    %1558 = vmatpush2.msra.mxu0 0.0
    %1559 = vmatprep.subr.mxu0 0.0
    %1560 = vmatpush2.msra.mxu0 0.0
    %1561 = vmatprep.subr.mxu0 0.0
    %1562 = vmatpush2.msra.mxu0 0.0
    %1563 = vmatprep.subr.mxu0 0.0
    %1564 = vmatpush2.msra.mxu0 0.0
    %1565 = vmatprep.subr.mxu0 0.0
    %1566 = vmatpush2.msra.mxu0 0.0
    %1567 = vmatprep.subr.mxu0 0.0
    %1568 = vmatpush2.msra.mxu0 0.0
    %1569 = vmatprep.subr.mxu0 0.0
    %1570 = vmatpush2.msra.mxu0 0.0
    %1571 = vmatprep.subr.mxu0 0.0
    %1572 = vmatpush2.msra.mxu0 0.0
    %1573 = vmatprep.subr.mxu0 0.0
    %1574 = vmatpush2.msra.mxu0 0.0
    %1575 = vmatprep.mubr.f32.mxu0 0.0
    %1576 = vmatmul.mubr.f32.gmra.mxu0 %v1509
    %v1577 = vpop.f32.mrf.mxu0
    %v1578 = vadd.f32 0.0, %v1577
    %v1579 = vpop.f32.mrf.mxu0
    %1580 = vdwg.mxu0
    %vm1581 = vcmp.ne.f32.partialorder %v843, %v843
    %vm1582 = vcmp.ne.f32.partialorder %v948, %v948
    %vm1583 = vcmp.ne.f32.partialorder %v1053, %v1053
    %vm1584 = vcmp.ne.f32.partialorder %v1158, %v1158
    %vm1585 = vcmp.ne.f32.partialorder %v1263, %v1263
    %vm1586 = vcmp.ne.f32.partialorder %v1368, %v1368
    %vm1587 = vcmp.ne.f32.partialorder %v1473, %v1473
    %vm1588 = vcmp.ne.f32.partialorder %v1578, %v1578
    %v1589 = vsel %vm1581, 0.0, %v843
    %v1590 = vsel %vm1582, 0.0, %v948
    %v1591 = vsel %vm1583, 0.0, %v1053
    %v1592 = vsel %vm1584, 0.0, %v1158
    %v1593 = vsel %vm1585, 0.0, %v1263
    %v1594 = vsel %vm1586, 0.0, %v1368
    %v1595 = vsel %vm1587, 0.0, %v1473
    %v1596 = vsel %vm1588, 0.0, %v1578
    %vm1597 = vcmp.eq.f32.partialorder %v1589, inf
    %vm1598 = vcmp.eq.f32.partialorder %v1590, inf
    %vm1599 = vcmp.eq.f32.partialorder %v1591, inf
    %vm1600 = vcmp.eq.f32.partialorder %v1592, inf
    %vm1601 = vcmp.eq.f32.partialorder %v1593, inf
    %vm1602 = vcmp.eq.f32.partialorder %v1594, inf
    %vm1603 = vcmp.eq.f32.partialorder %v1595, inf
    %vm1604 = vcmp.eq.f32.partialorder %v1596, inf
    %v1605 = vsel %vm1597, 3.4028235e+38, %v1589
    %v1606 = vsel %vm1598, 3.4028235e+38, %v1590
    %v1607 = vsel %vm1599, 3.4028235e+38, %v1591
    %v1608 = vsel %vm1600, 3.4028235e+38, %v1592
    %v1609 = vsel %vm1601, 3.4028235e+38, %v1593
    %v1610 = vsel %vm1602, 3.4028235e+38, %v1594
    %v1611 = vsel %vm1603, 3.4028235e+38, %v1595
    %v1612 = vsel %vm1604, 3.4028235e+38, %v1596
    %vm1613 = vcmp.eq.f32.partialorder %v1605, -inf
    %vm1614 = vcmp.eq.f32.partialorder %v1606, -inf
    %vm1615 = vcmp.eq.f32.partialorder %v1607, -inf
    %vm1616 = vcmp.eq.f32.partialorder %v1608, -inf
    %vm1617 = vcmp.eq.f32.partialorder %v1609, -inf
    %vm1618 = vcmp.eq.f32.partialorder %v1610, -inf
    %vm1619 = vcmp.eq.f32.partialorder %v1611, -inf
    %vm1620 = vcmp.eq.f32.partialorder %v1612, -inf
    %v1621 = vsel %vm1613, -3.4028235e+38, %v1605
    %v1622 = vsel %vm1614, -3.4028235e+38, %v1606
    %v1623 = vsel %vm1615, -3.4028235e+38, %v1607
    %v1624 = vsel %vm1616, -3.4028235e+38, %v1608
    %v1625 = vsel %vm1617, -3.4028235e+38, %v1609
    %v1626 = vsel %vm1618, -3.4028235e+38, %v1610
    %v1627 = vsel %vm1619, -3.4028235e+38, %v1611
    %v1628 = vsel %vm1620, -3.4028235e+38, %v1612
    %v1629 = vld [vmem:[#allocation2 + $0x10] sm:$0xff]
    %v1630 = vld [vmem:[#allocation2 + $0x40] sm:$0xff]
    %v1631 = vld [vmem:[#allocation2 + $0x70] sm:$0xff]
    %v1632 = vld [vmem:[#allocation2 + $0xa0] sm:$0xff]
    %v1633 = vld [vmem:[#allocation2 + $0x18] sm:$0xff]
    %v1634 = vld [vmem:[#allocation2 + $0x48] sm:$0xff]
    %v1635 = vld [vmem:[#allocation2 + $0x78] sm:$0xff]
    %v1636 = vld [vmem:[#allocation2 + $0xa8] sm:$0xff]
    %v1637 = vld [vmem:[#allocation2 + $0xc2] ss:$0 sm:$0xff]
    %v1646 = vrot.slane %v1621, 1
    %vm1647 = vcmask 1041409
    %v1648 = vsel %vm1647, %v1622, %v1646
    %v1649 = vrot.slane %v1623, 7
    %vm1650 = vcmask 1042434
    %v1651 = vsel %vm1650, %v1649, %v1648
    %v1652 = vrot.slane %v1624, 6
    %vm1653 = vcmask 1043459
    %v1654 = vsel %vm1653, %v1652, %v1651
    %v1655 = vrot.slane %v1625, 5
    %vm1656 = vcmask 1044484
    %v1657 = vsel %vm1656, %v1655, %v1654
    %v1658 = vrot.slane %v1626, 4
    %vm1659 = vcmask 1045509
    %v1660 = vsel %vm1659, %v1658, %v1657
    %v1661 = vrot.slane %v1627, 3
    %vm1662 = vcmask 1046534
    %v1663 = vsel %vm1662, %v1661, %v1660
    %v1664 = vrot.slane %v1628, 2
    %vm1665 = vcmask 1047559
    %v1666 = vsel %vm1665, %v1664, %v1663
    %v1667 = vsel %vm50, %v1666, 0
    %1669 = vmatprep.subr.mxu0 0.0
    %1670 = vmatpush1.msra.mxu0 0.0
    %1671 = vmatprep.subr.mxu0 0.0
    %1672 = vmatpush1.msra.mxu0 0.0
    %1673 = vmatprep.subr.mxu0 0.0
    %1674 = vmatpush1.msra.mxu0 0.0
    %1675 = vmatprep.subr.mxu0 0.0
    %1676 = vmatpush1.msra.mxu0 0.0
    %1677 = vmatprep.subr.mxu0 0.0
    %1678 = vmatpush1.msra.mxu0 0.0
    %1679 = vmatprep.subr.mxu0 0.0
    %1680 = vmatpush1.msra.mxu0 0.0
    %1681 = vmatprep.subr.mxu0 0.0
    %1682 = vmatpush1.msra.mxu0 0.0
    %1683 = vmatprep.subr.mxu0 0.0
    %1684 = vmatpush1.msra.mxu0 0.0
    %1685 = vmatprep.subr.mxu0 0.0
    %1686 = vmatpush1.msra.mxu0 0.0
    %1687 = vmatprep.subr.mxu0 0.0
    %1688 = vmatpush1.msra.mxu0 0.0
    %1689 = vmatprep.subr.mxu0 0.0
    %1690 = vmatpush1.msra.mxu0 0.0
    %1691 = vmatprep.subr.mxu0 0.0
    %1692 = vmatpush1.msra.mxu0 0.0
    %1693 = vmatprep.subr.mxu0 0.0
    %1694 = vmatpush1.msra.mxu0 %v1636
    %1695 = vmatprep.subr.mxu0 0.0
    %1696 = vmatpush1.msra.mxu0 %v1635
    %1697 = vmatprep.subr.mxu0 0.0
    %1698 = vmatpush1.msra.mxu0 %v1634
    %1699 = vmatprep.subr.mxu0 0.0
    %1700 = vmatpush1.msra.mxu0 %v1633
    %1701 = vmatprep.subr.mxu0 0.0
    %1702 = vmatpush2.msra.mxu0 0.0
    %1703 = vmatprep.subr.mxu0 0.0
    %1704 = vmatpush2.msra.mxu0 0.0
    %1705 = vmatprep.subr.mxu0 0.0
    %1706 = vmatpush2.msra.mxu0 0.0
    %1707 = vmatprep.subr.mxu0 0.0
    %1708 = vmatpush2.msra.mxu0 0.0
    %1709 = vmatprep.subr.mxu0 0.0
    %1710 = vmatpush2.msra.mxu0 0.0
    %1711 = vmatprep.subr.mxu0 0.0
    %1712 = vmatpush2.msra.mxu0 0.0
    %1713 = vmatprep.subr.mxu0 0.0
    %1714 = vmatpush2.msra.mxu0 0.0
    %1715 = vmatprep.subr.mxu0 0.0
    %1716 = vmatpush2.msra.mxu0 0.0
    %1717 = vmatprep.subr.mxu0 0.0
    %1718 = vmatpush2.msra.mxu0 0.0
    %1719 = vmatprep.subr.mxu0 0.0
    %1720 = vmatpush2.msra.mxu0 0.0
    %1721 = vmatprep.subr.mxu0 0.0
    %1722 = vmatpush2.msra.mxu0 0.0
    %1723 = vmatprep.subr.mxu0 0.0
    %1724 = vmatpush2.msra.mxu0 0.0
    %1725 = vmatprep.subr.mxu0 0.0
    %1726 = vmatpush2.msra.mxu0 0.0
    %1727 = vmatprep.subr.mxu0 0.0
    %1728 = vmatpush2.msra.mxu0 0.0
    %1729 = vmatprep.subr.mxu0 0.0
    %1730 = vmatpush2.msra.mxu0 0.0
    %1731 = vmatprep.subr.mxu0 0.0
    %1732 = vmatpush2.msra.mxu0 0.0
    %1733 = vmatprep.mubr.f32.mxu0 0.0
    %1734 = vmatmul.mubr.f32.gmra.mxu0 %v1667
    %v1735 = vpop.f32.mrf.mxu0
    %v1736 = vadd.f32 0.0, %v1735
    %v1737 = vpop.f32.mrf.mxu0
    %1738 = vdwg.mxu0
    %v1739 = vrot.slane %v1622, 7
    %v1740 = vsel %vm1647, %v1739, %v1621
    %v1741 = vrot.slane %v1623, 6
    %v1742 = vsel %vm1650, %v1741, %v1740
    %v1743 = vrot.slane %v1624, 5
    %v1744 = vsel %vm1653, %v1743, %v1742
    %v1745 = vrot.slane %v1625, 4
    %v1746 = vsel %vm1656, %v1745, %v1744
    %v1747 = vrot.slane %v1626, 3
    %v1748 = vsel %vm1659, %v1747, %v1746
    %v1749 = vrot.slane %v1627, 2
    %v1750 = vsel %vm1662, %v1749, %v1748
    %v1751 = vrot.slane %v1628, 1
    %v1752 = vsel %vm1665, %v1751, %v1750
    %v1753 = vsel %vm50, %v1752, 0
    %1755 = vmatprep.subr.mxu0 0.0
    %1756 = vmatpush1.msra.mxu0 0.0
    %1757 = vmatprep.subr.mxu0 0.0
    %1758 = vmatpush1.msra.mxu0 0.0
    %1759 = vmatprep.subr.mxu0 0.0
    %1760 = vmatpush1.msra.mxu0 0.0
    %1761 = vmatprep.subr.mxu0 0.0
    %1762 = vmatpush1.msra.mxu0 0.0
    %1763 = vmatprep.subr.mxu0 0.0
    %1764 = vmatpush1.msra.mxu0 0.0
    %1765 = vmatprep.subr.mxu0 0.0
    %1766 = vmatpush1.msra.mxu0 0.0
    %1767 = vmatprep.subr.mxu0 0.0
    %1768 = vmatpush1.msra.mxu0 0.0
    %1769 = vmatprep.subr.mxu0 0.0
    %1770 = vmatpush1.msra.mxu0 0.0
    %1771 = vmatprep.subr.mxu0 0.0
    %1772 = vmatpush1.msra.mxu0 0.0
    %1773 = vmatprep.subr.mxu0 0.0
    %1774 = vmatpush1.msra.mxu0 0.0
    %1775 = vmatprep.subr.mxu0 0.0
    %1776 = vmatpush1.msra.mxu0 0.0
    %1777 = vmatprep.subr.mxu0 0.0
    %1778 = vmatpush1.msra.mxu0 0.0
    %1779 = vmatprep.subr.mxu0 0.0
    %1780 = vmatpush1.msra.mxu0 %v1632
    %1781 = vmatprep.subr.mxu0 0.0
    %1782 = vmatpush1.msra.mxu0 %v1631
    %1783 = vmatprep.subr.mxu0 0.0
    %1784 = vmatpush1.msra.mxu0 %v1630
    %1785 = vmatprep.subr.mxu0 0.0
    %1786 = vmatpush1.msra.mxu0 %v1629
    %1787 = vmatprep.subr.mxu0 0.0
    %1788 = vmatpush2.msra.mxu0 0.0
    %1789 = vmatprep.subr.mxu0 0.0
    %1790 = vmatpush2.msra.mxu0 0.0
    %1791 = vmatprep.subr.mxu0 0.0
    %1792 = vmatpush2.msra.mxu0 0.0
    %1793 = vmatprep.subr.mxu0 0.0
    %1794 = vmatpush2.msra.mxu0 0.0
    %1795 = vmatprep.subr.mxu0 0.0
    %1796 = vmatpush2.msra.mxu0 0.0
    %1797 = vmatprep.subr.mxu0 0.0
    %1798 = vmatpush2.msra.mxu0 0.0
    %1799 = vmatprep.subr.mxu0 0.0
    %1800 = vmatpush2.msra.mxu0 0.0
    %1801 = vmatprep.subr.mxu0 0.0
    %1802 = vmatpush2.msra.mxu0 0.0
    %1803 = vmatprep.subr.mxu0 0.0
    %1804 = vmatpush2.msra.mxu0 0.0
    %1805 = vmatprep.subr.mxu0 0.0
    %1806 = vmatpush2.msra.mxu0 0.0
    %1807 = vmatprep.subr.mxu0 0.0
    %1808 = vmatpush2.msra.mxu0 0.0
    %1809 = vmatprep.subr.mxu0 0.0
    %1810 = vmatpush2.msra.mxu0 0.0
    %1811 = vmatprep.subr.mxu0 0.0
    %1812 = vmatpush2.msra.mxu0 0.0
    %1813 = vmatprep.subr.mxu0 0.0
    %1814 = vmatpush2.msra.mxu0 0.0
    %1815 = vmatprep.subr.mxu0 0.0
    %1816 = vmatpush2.msra.mxu0 0.0
    %1817 = vmatprep.subr.mxu0 0.0
    %1818 = vmatpush2.msra.mxu0 0.0
    %1819 = vmatprep.mubr.f32.mxu0 0.0
    %1820 = vmatmul.mubr.f32.gmra.mxu0 %v1753
    %v1821 = vpop.f32.mrf.mxu0
    %v1822 = vadd.f32 %v1736, %v1821
    %v1823 = vpop.f32.mrf.mxu0
    %1824 = vdwg.mxu0
    %v1825 = vadd.f32 %v1822, %v1637
    %v1826 = vmul.f32 %v1825, 0.5
    %v1827 = vrcp.pop 1.4142135
    %v1828 = vmul.f32 %v1825, %v1827
    %v1829 = verf.f32.pop %v1828
    %v1830 = vadd.f32 %v1829, 1.0
    %v1831 = vmul.f32 %v1826, %v1830
    %v1832 = vld [vmem:[#allocation2 + $0x20] sm:$0xff]
    %v1833 = vld [vmem:[#allocation2 + $0x50] sm:$0xff]
    %v1834 = vld [vmem:[#allocation2 + $0x80] sm:$0xff]
    %v1835 = vld [vmem:[#allocation2 + $0xb0] sm:$0xff]
    %v1836 = vld [vmem:[#allocation2 + $0xc3] ss:$0 sm:$0xff]
    %v1838 = vsel %vm50, %v1831, 0
    %1840 = vmatprep.subr.mxu0 0.0
    %1841 = vmatpush1.msra.mxu0 0.0
    %1842 = vmatprep.subr.mxu0 0.0
    %1843 = vmatpush1.msra.mxu0 0.0
    %1844 = vmatprep.subr.mxu0 0.0
    %1845 = vmatpush1.msra.mxu0 0.0
    %1846 = vmatprep.subr.mxu0 0.0
    %1847 = vmatpush1.msra.mxu0 0.0
    %1848 = vmatprep.subr.mxu0 0.0
    %1849 = vmatpush1.msra.mxu0 0.0
    %1850 = vmatprep.subr.mxu0 0.0
    %1851 = vmatpush1.msra.mxu0 0.0
    %1852 = vmatprep.subr.mxu0 0.0
    %1853 = vmatpush1.msra.mxu0 0.0
    %1854 = vmatprep.subr.mxu0 0.0
    %1855 = vmatpush1.msra.mxu0 0.0
    %1856 = vmatprep.subr.mxu0 0.0
    %1857 = vmatpush1.msra.mxu0 0.0
    %1858 = vmatprep.subr.mxu0 0.0
    %1859 = vmatpush1.msra.mxu0 0.0
    %1860 = vmatprep.subr.mxu0 0.0
    %1861 = vmatpush1.msra.mxu0 0.0
    %1862 = vmatprep.subr.mxu0 0.0
    %1863 = vmatpush1.msra.mxu0 0.0
    %1864 = vmatprep.subr.mxu0 0.0
    %1865 = vmatpush1.msra.mxu0 %v1835
    %1866 = vmatprep.subr.mxu0 0.0
    %1867 = vmatpush1.msra.mxu0 %v1834
    %1868 = vmatprep.subr.mxu0 0.0
    %1869 = vmatpush1.msra.mxu0 %v1833
    %1870 = vmatprep.subr.mxu0 0.0
    %1871 = vmatpush1.msra.mxu0 %v1832
    %1872 = vmatprep.subr.mxu0 0.0
    %1873 = vmatpush2.msra.mxu0 0.0
    %1874 = vmatprep.subr.mxu0 0.0
    %1875 = vmatpush2.msra.mxu0 0.0
    %1876 = vmatprep.subr.mxu0 0.0
    %1877 = vmatpush2.msra.mxu0 0.0
    %1878 = vmatprep.subr.mxu0 0.0
    %1879 = vmatpush2.msra.mxu0 0.0
    %1880 = vmatprep.subr.mxu0 0.0
    %1881 = vmatpush2.msra.mxu0 0.0
    %1882 = vmatprep.subr.mxu0 0.0
    %1883 = vmatpush2.msra.mxu0 0.0
    %1884 = vmatprep.subr.mxu0 0.0
    %1885 = vmatpush2.msra.mxu0 0.0
    %1886 = vmatprep.subr.mxu0 0.0
    %1887 = vmatpush2.msra.mxu0 0.0
    %1888 = vmatprep.subr.mxu0 0.0
    %1889 = vmatpush2.msra.mxu0 0.0
    %1890 = vmatprep.subr.mxu0 0.0
    %1891 = vmatpush2.msra.mxu0 0.0
    %1892 = vmatprep.subr.mxu0 0.0
    %1893 = vmatpush2.msra.mxu0 0.0
    %1894 = vmatprep.subr.mxu0 0.0
    %1895 = vmatpush2.msra.mxu0 0.0
    %1896 = vmatprep.subr.mxu0 0.0
    %1897 = vmatpush2.msra.mxu0 0.0
    %1898 = vmatprep.subr.mxu0 0.0
    %1899 = vmatpush2.msra.mxu0 0.0
    %1900 = vmatprep.subr.mxu0 0.0
    %1901 = vmatpush2.msra.mxu0 0.0
    %1902 = vmatprep.subr.mxu0 0.0
    %1903 = vmatpush2.msra.mxu0 0.0
    %1904 = vmatprep.mubr.f32.mxu0 0.0
    %1905 = vmatmul.mubr.f32.gmra.mxu0 %v1838
    %v1906 = vpop.f32.mrf.mxu0
    %v1907 = vadd.f32 %v1836, %v1906
    %v1908 = vpop.f32.mrf.mxu0
    %1909 = vdwg.mxu0
    %v1910 = vmul.f32 %v1907, 0.5
    %v1911 = vmul.f32 %v1907, %v1827
    %v1912 = verf.f32.pop %v1911
    %v1913 = vadd.f32 %v1912, 1.0
    %v1914 = vmul.f32 %v1910, %v1913
    %v1915 = vld [vmem:[#allocation2 + $0x28] sm:$0xff]
    %v1916 = vld [vmem:[#allocation2 + $0x58] sm:$0xff]
    %v1917 = vld [vmem:[#allocation2 + $0x88] sm:$0xff]
    %v1918 = vld [vmem:[#allocation2 + $0xb8] sm:$0xff]
    %v1919 = vld [vmem:[#allocation2 + $0xc4] ss:$0 sm:$0xff]
    %v1921 = vsel %vm50, %v1914, 0
    %1923 = vmatprep.subr.mxu0 0.0
    %1924 = vmatpush1.msra.mxu0 0.0
    %1925 = vmatprep.subr.mxu0 0.0
    %1926 = vmatpush1.msra.mxu0 0.0
    %1927 = vmatprep.subr.mxu0 0.0
    %1928 = vmatpush1.msra.mxu0 0.0
    %1929 = vmatprep.subr.mxu0 0.0
    %1930 = vmatpush1.msra.mxu0 0.0
    %1931 = vmatprep.subr.mxu0 0.0
    %1932 = vmatpush1.msra.mxu0 0.0
    %1933 = vmatprep.subr.mxu0 0.0
    %1934 = vmatpush1.msra.mxu0 0.0
    %1935 = vmatprep.subr.mxu0 0.0
    %1936 = vmatpush1.msra.mxu0 0.0
    %1937 = vmatprep.subr.mxu0 0.0
    %1938 = vmatpush1.msra.mxu0 0.0
    %1939 = vmatprep.subr.mxu0 0.0
    %1940 = vmatpush1.msra.mxu0 0.0
    %1941 = vmatprep.subr.mxu0 0.0
    %1942 = vmatpush1.msra.mxu0 0.0
    %1943 = vmatprep.subr.mxu0 0.0
    %1944 = vmatpush1.msra.mxu0 0.0
    %1945 = vmatprep.subr.mxu0 0.0
    %1946 = vmatpush1.msra.mxu0 0.0
    %1947 = vmatprep.subr.mxu0 0.0
    %1948 = vmatpush1.msra.mxu0 %v1918
    %1949 = vmatprep.subr.mxu0 0.0
    %1950 = vmatpush1.msra.mxu0 %v1917
    %1951 = vmatprep.subr.mxu0 0.0
    %1952 = vmatpush1.msra.mxu0 %v1916
    %1953 = vmatprep.subr.mxu0 0.0
    %1954 = vmatpush1.msra.mxu0 %v1915
    %1955 = vmatprep.subr.mxu0 0.0
    %1956 = vmatpush2.msra.mxu0 0.0
    %1957 = vmatprep.subr.mxu0 0.0
    %1958 = vmatpush2.msra.mxu0 0.0
    %1959 = vmatprep.subr.mxu0 0.0
    %1960 = vmatpush2.msra.mxu0 0.0
    %1961 = vmatprep.subr.mxu0 0.0
    %1962 = vmatpush2.msra.mxu0 0.0
    %1963 = vmatprep.subr.mxu0 0.0
    %1964 = vmatpush2.msra.mxu0 0.0
    %1965 = vmatprep.subr.mxu0 0.0
    %1966 = vmatpush2.msra.mxu0 0.0
    %1967 = vmatprep.subr.mxu0 0.0
    %1968 = vmatpush2.msra.mxu0 0.0
    %1969 = vmatprep.subr.mxu0 0.0
    %1970 = vmatpush2.msra.mxu0 0.0
    %1971 = vmatprep.subr.mxu0 0.0
    %1972 = vmatpush2.msra.mxu0 0.0
    %1973 = vmatprep.subr.mxu0 0.0
    %1974 = vmatpush2.msra.mxu0 0.0
    %1975 = vmatprep.subr.mxu0 0.0
    %1976 = vmatpush2.msra.mxu0 0.0
    %1977 = vmatprep.subr.mxu0 0.0
    %1978 = vmatpush2.msra.mxu0 0.0
    %1979 = vmatprep.subr.mxu0 0.0
    %1980 = vmatpush2.msra.mxu0 0.0
    %1981 = vmatprep.subr.mxu0 0.0
    %1982 = vmatpush2.msra.mxu0 0.0
    %1983 = vmatprep.subr.mxu0 0.0
    %1984 = vmatpush2.msra.mxu0 0.0
    %1985 = vmatprep.subr.mxu0 0.0
    %1986 = vmatpush2.msra.mxu0 0.0
    %1987 = vmatprep.mubr.f32.mxu0 0.0
    %1988 = vmatmul.mubr.f32.gmra.mxu0 %v1921
    %v1989 = vpop.f32.mrf.mxu0
    %v1990 = vadd.f32 %v1919, %v1989
    %v1991 = vpop.f32.mrf.mxu0
    %1992 = vdwg.mxu0
    %v1993 = vlaneseq
    %v1994 = vand.u32 %v1993, 127
    %vm1995 = vcmp.eq.s32.totalorder %v1994, 3
    %v1996 = vxor.u32 %v1990, 2147483648
    %v1997 = vmul.f32 %v1996, 1.442695
    %v1998 = vpow.pop %v1997
    %v1999 = vadd.f32 %v1998, 1.0
    %v2000 = vrcp.pop %v1999
    %v2001 = vmul.f32 1.0, %v2000
    %v2002 = vsel %vm1995, %v2001, %v1990
    %2003 = vst [vmem:[#allocation5] sm:$0xff] %v2002
    // Predicated region
    $region18: #{tpu_custom_call.1} parent=1 // pred_check
      _
    $region19: #{tpu_custom_call.1} parent=1 // pred_check_branch
      %2005 = sbr.rel (0) target = $region21
    $region20: #{tpu_custom_call.1} parent=1 // pred_region
      %s2007 = ssub.s32 128, 128
      %2008 = vsyncadd [#allocation4], %s2007
      %s2010 = sshll.u32 [#allocation5], 4
      %s2011 = int_to_ptr.vmem [resolvable:$true] %s2010
      %2013 = dma.vmem_to_hbm [thread:$0]  %s2011, 128, %s3, [#allocation4]
    $region21: #{tpu_custom_call.1} parent=1 // pred_fallthru
      _
    // Predicated region
    $region22: #{tpu_custom_call.1} parent=1 // pred_check
      _
    $region23: #{tpu_custom_call.1} parent=1 // pred_check_branch
      %2015 = sbr.rel (0) target = $region25
    $region24: #{tpu_custom_call.1} parent=1 // pred_region
      %2016 = dma.done [#allocation4], 128
    $region25: #{tpu_custom_call.1} parent=1 // pred_fallthru
      _
    %2017 = vsyncpa [#allocation3], 1
    %2018 = vsyncpa [#allocation4], 1

</llo_original>
